<compile_context>
chip_gen: v6e
topology: v6e:2x2x1
jax: 0.10.0
libtpu: 0.0.40
codegen_flags: <defaults>
</compile_context>

<pallas_src>
import functools
import random

import jax
import jax.numpy as jnp
from jax.experimental import pallas as pl
from jax.experimental.pallas import tpu as pltpu


_LANE = 512                       # lane width (multiple of 128)
_SUBLANE = 8
_CHUNK = _SUBLANE * _LANE         # time-padding granularity (4096 samples)
_STREAM_TARGET_ROWS = 64          # ~128 KiB per stream per DMA chunk
_STREAM_MAX_CHUNKS = 12           # cap on unrolled chunk count
_FALLBACK_TILE_R = 512            # 1 MiB tiles for the rare two-pass path
_VMEM_HEADROOM = 16 << 20         # VMEM kept free of the resident buffers


def _vmem_cap_bytes():
    """Physical VMEM capacity (generation aware), conservative default (v7x)."""
    get = getattr(pltpu, "get_tpu_info", None)
    if get is not None:
        try:
            cap = int(getattr(get(), "vmem_capacity_bytes", 0))
            if cap > 0:
                return cap
        except Exception:
            pass
    return 64 << 20


# ----------------------------------------------------------------------------
# Pallas kernels
# ----------------------------------------------------------------------------
def _fused_stream_kernel(chunks, gain_ref, sig_hbm, noi_hbm, out_hbm,
                         sig_buf, noi_buf, in_sems, out_sems):
    """Single-pass add_noise for one channel (grid axis 0 = channel).

    sig_hbm/noi_hbm/out_hbm: (C, R, LANE) refs left in HBM (memory_space=ANY).
    sig_buf/noi_buf: (R, LANE) whole-channel resident VMEM scratch.
    gain_ref: SMEM (1,) holding 10^(-snr_db/20).
    `chunks` is a static tuple of (row_offset, rows) covering [0, R).
    """
    c = pl.program_id(0)

    # Issue every input DMA up front (disjoint destinations, per-chunk sems).
    in_copies = []
    for i, (off, rows) in enumerate(chunks):
        cs = pltpu.make_async_copy(sig_hbm.at[c, pl.ds(off, rows), :],
                                   sig_buf.at[pl.ds(off, rows), :],
                                   in_sems.at[0, i])
        cn = pltpu.make_async_copy(noi_hbm.at[c, pl.ds(off, rows), :],
                                   noi_buf.at[pl.ds(off, rows), :],
                                   in_sems.at[1, i])
        cs.start()
        cn.start()
        in_copies.append((cs, cn))

    # Energy accumulation, overlapped with the still-in-flight input DMAs.
    es = jnp.zeros((1, 1), jnp.float32)
    en = jnp.zeros((1, 1), jnp.float32)
    for i, (off, rows) in enumerate(chunks):
        cs, cn = in_copies[i]
        cs.wait()
        cn.wait()
        s = sig_buf[pl.ds(off, rows), :]
        n = noi_buf[pl.ds(off, rows), :]
        es = es + jnp.sum(jnp.sum(s * s, axis=-1, keepdims=True),
                          axis=0, keepdims=True)
        en = en + jnp.sum(jnp.sum(n * n, axis=-1, keepdims=True),
                          axis=0, keepdims=True)

    # scale = sqrt(Es/En) * 10^(-snr/20) (== torchaudio's log10 formulation).
    # En == 0 (all-silent noise) -> inf, matching the reference behaviour.
    scale = jnp.sqrt(es / en) * gain_ref[0]                      # (1, 1)

    # Mix in place and stream results back; store DMAs overlap the next
    # chunk's compute and are all drained before the grid step ends.
    out_copies = []
    for i, (off, rows) in enumerate(chunks):
        sl = pl.ds(off, rows)
        sig_buf[sl, :] = sig_buf[sl, :] + scale * noi_buf[sl, :]
        cp = pltpu.make_async_copy(sig_buf.at[sl, :], out_hbm.at[c, sl, :],
                                   out_sems.at[i])
        cp.start()
        out_copies.append(cp)
    for cp in out_copies:
        cp.wait()


def _energy_kernel(sig_ref, noi_ref, es_ref, en_ref):
    """Fallback pass 1 (very long signals): per-channel sum-of-squares."""
    @pl.when(pl.program_id(1) == 0)
    def _():
        es_ref[...] = jnp.zeros_like(es_ref)
        en_ref[...] = jnp.zeros_like(en_ref)

    s = sig_ref[...]                                              # (tile_r, L)
    n = noi_ref[...]
    es_ref[...] += jnp.sum(jnp.sum(s * s, axis=-1, keepdims=True),
                           axis=0, keepdims=True)
    en_ref[...] += jnp.sum(jnp.sum(n * n, axis=-1, keepdims=True),
                           axis=0, keepdims=True)


def _apply_kernel(scale_ref, sig_ref, noi_ref, out_ref):
    """Fallback pass 2: out = sig + scale[c] * noise (scale precomputed, SMEM)."""
    out_ref[...] = sig_ref[...] + scale_ref[pl.program_id(0)] * noi_ref[...]


# ----------------------------------------------------------------------------
# Layout helpers: (T, C) <-> channel-major, sublane/lane-dense (C, R, LANE)
# ----------------------------------------------------------------------------
def _layout_crl(x_tc):
    """(T, C) -> (C, R, LANE) f32, time zero-padded so R % 8 == 0."""
    T, C = x_tc.shape
    T_pad = -(-T // _CHUNK) * _CHUNK
    x_ct = x_tc.reshape(1, T) if C == 1 else x_tc.T     # mono: pure reshape
    x_ct = x_ct.astype(jnp.float32)
    if T_pad != T:
        x_ct = jnp.pad(x_ct, ((0, 0), (0, T_pad - T)))
    return x_ct.reshape(C, T_pad // _LANE, _LANE)


def _unlayout_crl(x_crl, T, C):
    x_ct = x_crl.reshape(C, -1)[:, :T]
    if C == 1:
        return x_ct.reshape(T, 1)
    return x_ct.T


_layout = jax.jit(_layout_crl)


def _make_chunks(R):
    """Static (offset, rows) chunks covering R rows; all multiples of 8."""
    n = max(1, min(_STREAM_MAX_CHUNKS, -(-R // _STREAM_TARGET_ROWS)))
    per = -(-R // n)
    per = -(-per // _SUBLANE) * _SUBLANE
    chunks, off = [], 0
    while off < R:
        rows = min(per, R - off)
        chunks.append((off, rows))
        off += rows
    return tuple(chunks)


# ----------------------------------------------------------------------------
# add_noise on laid-out (C, R, LANE) data — the chained hot path
# ----------------------------------------------------------------------------
def _fused_call(sig, noi, gain, cap):
    C, R, L = sig.shape
    chunks = _make_chunks(R)
    n_chunks = len(chunks)
    vmem_need = 2 * R * L * 4 + (2 << 20)
    vmem_limit = int(min(cap - (4 << 20), max(vmem_need, 32 << 20)))
    return pl.pallas_call(
        functools.partial(_fused_stream_kernel, chunks),
        out_shape=jax.ShapeDtypeStruct((C, R, L), jnp.float32),
        grid=(C,),
        in_specs=[
            pl.BlockSpec(memory_space=pltpu.MemorySpace.SMEM),    # gain
            pl.BlockSpec(memory_space=pl.ANY),                    # sig (HBM)
            pl.BlockSpec(memory_space=pl.ANY),                    # noise (HBM)
        ],
        out_specs=pl.BlockSpec(memory_space=pl.ANY),              # out (HBM)
        scratch_shapes=[
            pltpu.VMEM((R, L), jnp.float32),                      # resident sig
            pltpu.VMEM((R, L), jnp.float32),                      # resident noise
            pltpu.SemaphoreType.DMA((2, n_chunks)),               # input sems
            pltpu.SemaphoreType.DMA((n_chunks,)),                 # output sems
        ],
        compiler_params=pltpu.CompilerParams(
            dimension_semantics=("arbitrary",),
            vmem_limit_bytes=vmem_limit),
    )(gain, sig, noi)


def _twopass_call(sig, noi, gain, cap):
    """Fallback for signals too long to keep resident in VMEM (5 HBM passes)."""
    C, R, L = sig.shape
    tile_r = _FALLBACK_TILE_R
    R_pad = -(-R // tile_r) * tile_r
    if R_pad != R:                      # zero rows: harmless to energies & mix
        pad = ((0, 0), (0, R_pad - R), (0, 0))
        sig_p, noi_p = jnp.pad(sig, pad), jnp.pad(noi, pad)
    else:
        sig_p, noi_p = sig, noi
    n_r = R_pad // tile_r
    vmem_limit = int(min(32 << 20, cap - (4 << 20)))

    es, en = pl.pallas_call(
        _energy_kernel,
        out_shape=(jax.ShapeDtypeStruct((C, 1, 1), jnp.float32),
                   jax.ShapeDtypeStruct((C, 1, 1), jnp.float32)),
        grid=(C, n_r),
        in_specs=[
            pl.BlockSpec((None, tile_r, L), lambda c, r: (c, r, 0)),
            pl.BlockSpec((None, tile_r, L), lambda c, r: (c, r, 0)),
        ],
        out_specs=(pl.BlockSpec((None, 1, 1), lambda c, r: (c, 0, 0)),
                   pl.BlockSpec((None, 1, 1), lambda c, r: (c, 0, 0))),
        compiler_params=pltpu.CompilerParams(
            dimension_semantics=("parallel", "arbitrary"),
            vmem_limit_bytes=vmem_limit),
    )(sig_p, noi_p)

    # Per-channel scale computed once outside the kernel (tiny XLA op).
    scale = (jnp.sqrt(es / en).reshape(C) * gain[0]).astype(jnp.float32)

    out = pl.pallas_call(
        _apply_kernel,
        out_shape=jax.ShapeDtypeStruct((C, R_pad, L), jnp.float32),
        grid=(C, n_r),
        in_specs=[
            pl.BlockSpec(memory_space=pltpu.MemorySpace.SMEM),    # scale (C,)
            pl.BlockSpec((None, tile_r, L), lambda c, r: (c, r, 0)),
            pl.BlockSpec((None, tile_r, L), lambda c, r: (c, r, 0)),
        ],
        out_specs=pl.BlockSpec((None, tile_r, L), lambda c, r: (c, r, 0)),
        compiler_params=pltpu.CompilerParams(
            dimension_semantics=("parallel", "parallel"),
            vmem_limit_bytes=vmem_limit),
    )(scale, sig_p, noi_p)

    if R_pad != R:
        out = out[:, :R, :]
    return out


def _add_noise_crl_impl(sig_crl, noi_crl, snr_db, force_fallback=False):
    """add_noise on already laid-out (C, R, LANE) f32 signals (zero-padded tail).

    Zero padding is closed under the op, so chained calls (AddMultiSpk) stay
    in this layout with no per-call pad / slice / transpose copies.
    """
    C, R, L = sig_crl.shape
    gain = jnp.power(jnp.float32(10.0),
                     -snr_db / 20.0).reshape(1).astype(jnp.float32)
    cap = _vmem_cap_bytes()
    resident = 2 * R * L * 4
    if (not force_fallback) and resident <= cap - _VMEM_HEADROOM:
        return _fused_call(sig_crl, noi_crl, gain, cap)
    return _twopass_call(sig_crl, noi_crl, gain, cap)


_add_noise_crl = jax.jit(_add_noise_crl_impl, static_argnames=("force_fallback",))


# ----------------------------------------------------------------------------
# add_noise on (T, C) data — equivalent of torchaudio.functional.add_noise
# ----------------------------------------------------------------------------
@functools.partial(jax.jit, static_argnames=("force_fallback",))
def _add_noise_tc(waveform_tc, noise_tc, snr_db, force_fallback=False):
    T, C = waveform_tc.shape
    sig = _layout_crl(waveform_tc)
    noi = _layout_crl(noise_tc)
    out = _add_noise_crl_impl(sig, noi, snr_db, force_fallback=force_fallback)
    return _unlayout_crl(out, T, C)


def add_noise(waveform_tc, noise_tc, snr_db):
    """Pallas implementation of torchaudio.functional.add_noise on (T, C)."""
    return _add_noise_tc(waveform_tc, noise_tc, jnp.float32(snr_db))


# Pure-JAX reference (mirrors torchaudio's log10 formulation) — verification.
def add_noise_ref(waveform_tc, noise_tc, snr_db):
    sig = waveform_tc.astype(jnp.float32).T
    noi = noise_tc.astype(jnp.float32).T
    es = jnp.sum(sig * sig, axis=-1, keepdims=True)
    en = jnp.sum(noi * noi, axis=-1, keepdims=True)
    snr0 = 10.0 * (jnp.log10(es) - jnp.log10(en))
    scale = 10.0 ** ((snr0 - snr_db) / 20.0)
    return (sig + scale * noi).T


# ----------------------------------------------------------------------------
# Host-side glue mirroring the PyTorch module
# ----------------------------------------------------------------------------
def cut_or_pad(data, size):
    """Pad (trailing zeros along time) or trim (T, C) data to T == size."""
    t = data.shape[0]
    if t < size:
        data = jnp.pad(data, ((0, size - t), (0, 0)))
    elif t > size:
        data = data[:size]
    assert data.shape[0] == size
    return data


class AddMultiSpk:
    """JAX/Pallas equivalent of the PyTorch AddMultiSpk augmentation.

    speech_dataset: list of pre-synthesized (T_i, C) interferer waveforms.
    With add_noise_fn=None (default) chained mixes stay in the padded
    (C, R, LANE) device layout; a (T, C)-space mixing function (e.g. the
    pure-JAX reference) may be supplied instead for verification.
    """
    # TODO(synk): the original module calls load_audio() on files from the
    # dataset (file I/O + audio decoding) — no Pallas equivalent; interferer
    # waveforms are supplied as in-memory arrays instead.

    def __init__(self, speech_dataset=None, snr_target=None, interferer_spk=None,
                 seed=0, add_noise_fn=None):
        self.snr_levels = [snr_target] if snr_target else [-5, 0, 5, 10, 15, 20]
        self.interferer_spk = [interferer_spk] if interferer_spk else [0, 0, 1, 2]
        self.speech_dataset = speech_dataset
        self._rng = random.Random(seed)     # deterministic host-side "random"
        self._add_noise_fn = add_noise_fn

    def __call__(self, speech):
        if self.speech_dataset is None:
            return speech
        if speech.shape[0] / 16000 < 2:
            return speech
        T, C = speech.shape

        use_layout = self._add_noise_fn is None
        if use_layout:                       # chained Pallas path, stays in layout
            prep = _layout
            mix = lambda a, b, snr: _add_noise_crl(a, b, jnp.float32(snr))
        else:                                # (T, C)-space path (reference)
            prep = lambda x: x
            mix = self._add_noise_fn

        num_interferer = self._rng.choice(self.interferer_spk)
        interferer_signal = None
        for _ in range(num_interferer):
            interferer = self._rng.choice(self.speech_dataset)
            interferer_length = interferer.shape[0] / 16000
            if 2 <= interferer_length <= 10:
                interferer = prep(cut_or_pad(interferer, T))
                if interferer_signal is None:
                    interferer_signal = interferer
                else:
                    snr_level = float(self._rng.choice([-5, 0, 5, 10, 15]))
                    interferer_signal = mix(interferer_signal, interferer, snr_level)
        if interferer_signal is None:
            return speech
        snr_level = float(self._rng.choice(self.snr_levels))
        out = mix(prep(speech), interferer_signal, snr_level)
        if use_layout:
            out = _unlayout_crl(out, T, C)
        return out


# ----------------------------------------------------------------------------
if __name__ == "__main__":
    key = jax.random.PRNGKey(0)
    k_speech, k_i0, k_i1, k_s2, k_n2 = jax.random.split(key, 5)

    # --- streaming fused kernel vs. pure-JAX reference (mono, 2 DMA chunks) ---
    T1 = 48000                                  # 3.0 s @ 16 kHz, mono
    sig1 = jax.random.normal(k_speech, (T1, 1), dtype=jnp.float32) * 0.1
    noi1 = jax.random.normal(k_i0, (T1, 1), dtype=jnp.float32) * 0.05
    out1 = jax.block_until_ready(add_noise(sig1, noi1, 5.0))
    ref1 = add_noise_ref(sig1, noi1, 5.0)
    assert jnp.allclose(out1, ref1, rtol=1e-4, atol=1e-5), "mono mismatch"

    # --- stereo: exercises the channel grid axis ---
    T2 = 40960
    sig2 = jax.random.normal(k_s2, (T2, 2), dtype=jnp.float32) * 0.1
    noi2 = jax.random.normal(k_n2, (T2, 2), dtype=jnp.float32) * 0.05
    out2 = jax.block_until_ready(add_noise(sig2, noi2, -5.0))
    ref2 = add_noise_ref(sig2, noi2, -5.0)
    assert jnp.allclose(out2, ref2, rtol=1e-4, atol=1e-5), "stereo mismatch"

    # --- forced two-pass fallback (long-signal path, multi row-tile reduce) ---
    T3 = 300000
    k_s3, k_n3 = jax.random.split(k_i1)
    sig3 = jax.random.normal(k_s3, (T3, 1), dtype=jnp.float32) * 0.1
    noi3 = jax.random.normal(k_n3, (T3, 1), dtype=jnp.float32) * 0.05
    out3 = jax.block_until_ready(
        _add_noise_tc(sig3, noi3, jnp.float32(10.0), force_fallback=True))
    ref3 = add_noise_ref(sig3, noi3, 10.0)
    assert jnp.allclose(out3, ref3, rtol=1e-4, atol=1e-5), "fallback mismatch"

    # --- end-to-end module check (identical deterministic random choices) ---
    speech = sig1
    dataset = [
        jax.random.normal(k_i0, (40000, 1), dtype=jnp.float32) * 0.05,  # 2.5 s
        jax.random.normal(k_i1, (64000, 1), dtype=jnp.float32) * 0.05,  # 4.0 s
    ]
    aug_pallas = AddMultiSpk(speech_dataset=dataset, snr_target=5,
                             interferer_spk=2, seed=0)                  # Pallas
    aug_ref = AddMultiSpk(speech_dataset=dataset, snr_target=5,
                          interferer_spk=2, seed=0, add_noise_fn=add_noise_ref)

    out = jax.block_until_ready(aug_pallas(speech))
    ref = jax.block_until_ready(aug_ref(speech))

    assert out.shape == speech.shape and out.dtype == jnp.float32
    assert jnp.allclose(out, ref, rtol=1e-4, atol=1e-4), "mismatch vs reference"
    print("KERNEL_OK")
</pallas_src>

<mosaic_0001>
module attributes {stable_mosaic.version = 11 : i64} {
  func.func @_fused_stream_kernel(%arg0: i32, %arg1: memref<1xf32, #tpu.memory_space<smem>>, %arg2: memref<1x96x512xf32, #tpu.memory_space<any>>, %arg3: memref<1x96x512xf32, #tpu.memory_space<any>>, %arg4: memref<1x96x512xf32, #tpu.memory_space<any>>, %arg5: memref<96x512xf32, #tpu.memory_space<vmem>>, %arg6: memref<96x512xf32, #tpu.memory_space<vmem>>, %arg7: memref<2x2x!tpu.dma_semaphore, #tpu.memory_space<semaphore_mem>>, %arg8: memref<2x!tpu.dma_semaphore, #tpu.memory_space<semaphore_mem>>) attributes {dimension_semantics = [#tpu.dimension_semantics<arbitrary>], iteration_bounds = array<i64: 1>, scalar_prefetch = 0 : i64, scratch_operands = 4 : i64, tpu.core_type = #tpu.core_type<tc>, window_params = [{transform_indices = @transform_0, window_bounds = array<i64: 1>}, {}, {}, {}]} {
    %c0_i32 = arith.constant 0 : i32
    %c0_i32_0 = arith.constant 0 : i32
    %c0_i32_1 = arith.constant 0 : i32
    %c0_i32_2 = arith.constant 0 : i32
    %0 = tpu.memref_slice %arg2[%arg0, %c0_i32_1, %c0_i32_2] : memref<1x96x512xf32, #tpu.memory_space<any>> -> memref<1x48x512xf32, #tpu.memory_space<any>>
    %1 = tpu.memref_squeeze %0 : memref<1x48x512xf32, #tpu.memory_space<any>> -> memref<48x512xf32, #tpu.memory_space<any>>
    %c0_i32_3 = arith.constant 0 : i32
    %c0_i32_4 = arith.constant 0 : i32
    %2 = tpu.memref_slice %arg5[%c0_i32_3, %c0_i32_4] : memref<96x512xf32, #tpu.memory_space<vmem>> -> memref<48x512xf32, #tpu.memory_space<vmem>>
    %3 = tpu.memref_slice %arg7[%c0_i32, %c0_i32_0] : memref<2x2x!tpu.dma_semaphore, #tpu.memory_space<semaphore_mem>> -> memref<1x1x!tpu.dma_semaphore, #tpu.memory_space<semaphore_mem>>
    %4 = tpu.memref_squeeze %3 : memref<1x1x!tpu.dma_semaphore, #tpu.memory_space<semaphore_mem>> -> memref<!tpu.dma_semaphore, #tpu.memory_space<semaphore_mem>>
    tpu.enqueue_dma source(%1 : memref<48x512xf32, #tpu.memory_space<any>>) target(%2 : memref<48x512xf32, #tpu.memory_space<vmem>>) target_semaphore(%4 : memref<!tpu.dma_semaphore, #tpu.memory_space<semaphore_mem>>)
    %c1_i32 = arith.constant 1 : i32
    %c0_i32_5 = arith.constant 0 : i32
    %c0_i32_6 = arith.constant 0 : i32
    %c0_i32_7 = arith.constant 0 : i32
    %5 = tpu.memref_slice %arg3[%arg0, %c0_i32_6, %c0_i32_7] : memref<1x96x512xf32, #tpu.memory_space<any>> -> memref<1x48x512xf32, #tpu.memory_space<any>>
    %6 = tpu.memref_squeeze %5 : memref<1x48x512xf32, #tpu.memory_space<any>> -> memref<48x512xf32, #tpu.memory_space<any>>
    %c0_i32_8 = arith.constant 0 : i32
    %c0_i32_9 = arith.constant 0 : i32
    %7 = tpu.memref_slice %arg6[%c0_i32_8, %c0_i32_9] : memref<96x512xf32, #tpu.memory_space<vmem>> -> memref<48x512xf32, #tpu.memory_space<vmem>>
    %8 = tpu.memref_slice %arg7[%c1_i32, %c0_i32_5] : memref<2x2x!tpu.dma_semaphore, #tpu.memory_space<semaphore_mem>> -> memref<1x1x!tpu.dma_semaphore, #tpu.memory_space<semaphore_mem>>
    %9 = tpu.memref_squeeze %8 : memref<1x1x!tpu.dma_semaphore, #tpu.memory_space<semaphore_mem>> -> memref<!tpu.dma_semaphore, #tpu.memory_space<semaphore_mem>>
    tpu.enqueue_dma source(%6 : memref<48x512xf32, #tpu.memory_space<any>>) target(%7 : memref<48x512xf32, #tpu.memory_space<vmem>>) target_semaphore(%9 : memref<!tpu.dma_semaphore, #tpu.memory_space<semaphore_mem>>)
    %c0_i32_10 = arith.constant 0 : i32
    %c1_i32_11 = arith.constant 1 : i32
    %c48_i32 = arith.constant 48 : i32
    %c0_i32_12 = arith.constant 0 : i32
    %10 = tpu.memref_slice %arg2[%arg0, %c48_i32, %c0_i32_12] : memref<1x96x512xf32, #tpu.memory_space<any>> -> memref<1x48x512xf32, #tpu.memory_space<any>>
    %11 = tpu.memref_squeeze %10 : memref<1x48x512xf32, #tpu.memory_space<any>> -> memref<48x512xf32, #tpu.memory_space<any>>
    %c48_i32_13 = arith.constant 48 : i32
    %c0_i32_14 = arith.constant 0 : i32
    %12 = tpu.memref_slice %arg5[%c48_i32_13, %c0_i32_14] : memref<96x512xf32, #tpu.memory_space<vmem>> -> memref<48x512xf32, #tpu.memory_space<vmem>>
    %13 = tpu.memref_slice %arg7[%c0_i32_10, %c1_i32_11] : memref<2x2x!tpu.dma_semaphore, #tpu.memory_space<semaphore_mem>> -> memref<1x1x!tpu.dma_semaphore, #tpu.memory_space<semaphore_mem>>
    %14 = tpu.memref_squeeze %13 : memref<1x1x!tpu.dma_semaphore, #tpu.memory_space<semaphore_mem>> -> memref<!tpu.dma_semaphore, #tpu.memory_space<semaphore_mem>>
    tpu.enqueue_dma source(%11 : memref<48x512xf32, #tpu.memory_space<any>>) target(%12 : memref<48x512xf32, #tpu.memory_space<vmem>>) target_semaphore(%14 : memref<!tpu.dma_semaphore, #tpu.memory_space<semaphore_mem>>)
    %c1_i32_15 = arith.constant 1 : i32
    %c1_i32_16 = arith.constant 1 : i32
    %c48_i32_17 = arith.constant 48 : i32
    %c0_i32_18 = arith.constant 0 : i32
    %15 = tpu.memref_slice %arg3[%arg0, %c48_i32_17, %c0_i32_18] : memref<1x96x512xf32, #tpu.memory_space<any>> -> memref<1x48x512xf32, #tpu.memory_space<any>>
    %16 = tpu.memref_squeeze %15 : memref<1x48x512xf32, #tpu.memory_space<any>> -> memref<48x512xf32, #tpu.memory_space<any>>
    %c48_i32_19 = arith.constant 48 : i32
    %c0_i32_20 = arith.constant 0 : i32
    %17 = tpu.memref_slice %arg6[%c48_i32_19, %c0_i32_20] : memref<96x512xf32, #tpu.memory_space<vmem>> -> memref<48x512xf32, #tpu.memory_space<vmem>>
    %18 = tpu.memref_slice %arg7[%c1_i32_15, %c1_i32_16] : memref<2x2x!tpu.dma_semaphore, #tpu.memory_space<semaphore_mem>> -> memref<1x1x!tpu.dma_semaphore, #tpu.memory_space<semaphore_mem>>
    %19 = tpu.memref_squeeze %18 : memref<1x1x!tpu.dma_semaphore, #tpu.memory_space<semaphore_mem>> -> memref<!tpu.dma_semaphore, #tpu.memory_space<semaphore_mem>>
    tpu.enqueue_dma source(%16 : memref<48x512xf32, #tpu.memory_space<any>>) target(%17 : memref<48x512xf32, #tpu.memory_space<vmem>>) target_semaphore(%19 : memref<!tpu.dma_semaphore, #tpu.memory_space<semaphore_mem>>)
    %cst = arith.constant 0.000000e+00 : f32
    %20 = vector.broadcast %cst : f32 to vector<1x1xf32>
    %cst_21 = arith.constant 0.000000e+00 : f32
    %21 = vector.broadcast %cst_21 : f32 to vector<1x1xf32>
    %c0_i32_22 = arith.constant 0 : i32
    %c0_i32_23 = arith.constant 0 : i32
    %c0_i32_24 = arith.constant 0 : i32
    %c0_i32_25 = arith.constant 0 : i32
    %22 = tpu.memref_slice %arg2[%arg0, %c0_i32_24, %c0_i32_25] : memref<1x96x512xf32, #tpu.memory_space<any>> -> memref<1x48x512xf32, #tpu.memory_space<any>>
    %23 = tpu.memref_squeeze %22 : memref<1x48x512xf32, #tpu.memory_space<any>> -> memref<48x512xf32, #tpu.memory_space<any>>
    %c0_i32_26 = arith.constant 0 : i32
    %c0_i32_27 = arith.constant 0 : i32
    %24 = tpu.memref_slice %arg5[%c0_i32_26, %c0_i32_27] : memref<96x512xf32, #tpu.memory_space<vmem>> -> memref<48x512xf32, #tpu.memory_space<vmem>>
    %25 = tpu.memref_slice %arg7[%c0_i32_22, %c0_i32_23] : memref<2x2x!tpu.dma_semaphore, #tpu.memory_space<semaphore_mem>> -> memref<1x1x!tpu.dma_semaphore, #tpu.memory_space<semaphore_mem>>
    %26 = tpu.memref_squeeze %25 : memref<1x1x!tpu.dma_semaphore, #tpu.memory_space<semaphore_mem>> -> memref<!tpu.dma_semaphore, #tpu.memory_space<semaphore_mem>>
    tpu.wait_dma2 semaphore(%26 : memref<!tpu.dma_semaphore, #tpu.memory_space<semaphore_mem>>) src(%23 : memref<48x512xf32, #tpu.memory_space<any>>) dst(%24 : memref<48x512xf32, #tpu.memory_space<vmem>>)
    %c1_i32_28 = arith.constant 1 : i32
    %c0_i32_29 = arith.constant 0 : i32
    %c0_i32_30 = arith.constant 0 : i32
    %c0_i32_31 = arith.constant 0 : i32
    %27 = tpu.memref_slice %arg3[%arg0, %c0_i32_30, %c0_i32_31] : memref<1x96x512xf32, #tpu.memory_space<any>> -> memref<1x48x512xf32, #tpu.memory_space<any>>
    %28 = tpu.memref_squeeze %27 : memref<1x48x512xf32, #tpu.memory_space<any>> -> memref<48x512xf32, #tpu.memory_space<any>>
    %c0_i32_32 = arith.constant 0 : i32
    %c0_i32_33 = arith.constant 0 : i32
    %29 = tpu.memref_slice %arg6[%c0_i32_32, %c0_i32_33] : memref<96x512xf32, #tpu.memory_space<vmem>> -> memref<48x512xf32, #tpu.memory_space<vmem>>
    %30 = tpu.memref_slice %arg7[%c1_i32_28, %c0_i32_29] : memref<2x2x!tpu.dma_semaphore, #tpu.memory_space<semaphore_mem>> -> memref<1x1x!tpu.dma_semaphore, #tpu.memory_space<semaphore_mem>>
    %31 = tpu.memref_squeeze %30 : memref<1x1x!tpu.dma_semaphore, #tpu.memory_space<semaphore_mem>> -> memref<!tpu.dma_semaphore, #tpu.memory_space<semaphore_mem>>
    tpu.wait_dma2 semaphore(%31 : memref<!tpu.dma_semaphore, #tpu.memory_space<semaphore_mem>>) src(%28 : memref<48x512xf32, #tpu.memory_space<any>>) dst(%29 : memref<48x512xf32, #tpu.memory_space<vmem>>)
    %c0 = arith.constant 0 : index
    %c0_34 = arith.constant 0 : index
    %32 = vector.load %arg5[%c0, %c0_34] : memref<96x512xf32, #tpu.memory_space<vmem>>, vector<48x512xf32>
    %c0_35 = arith.constant 0 : index
    %c0_36 = arith.constant 0 : index
    %33 = vector.load %arg6[%c0_35, %c0_36] : memref<96x512xf32, #tpu.memory_space<vmem>>, vector<48x512xf32>
    %34 = arith.mulf %32, %32 : vector<48x512xf32>
    %cst_37 = arith.constant dense<0.000000e+00> : vector<48xf32>
    %35 = vector.multi_reduction <add>, %34, %cst_37 [1] : vector<48x512xf32> to vector<48xf32>
    %36 = vector.shape_cast %35 : vector<48xf32> to vector<48x1xf32>
    %cst_38 = arith.constant dense<0.000000e+00> : vector<1xf32>
    %37 = vector.multi_reduction <add>, %36, %cst_38 [0] : vector<48x1xf32> to vector<1xf32>
    %38 = vector.shape_cast %37 : vector<1xf32> to vector<1x1xf32>
    %39 = arith.addf %20, %38 : vector<1x1xf32>
    %40 = arith.mulf %33, %33 : vector<48x512xf32>
    %cst_39 = arith.constant dense<0.000000e+00> : vector<48xf32>
    %41 = vector.multi_reduction <add>, %40, %cst_39 [1] : vector<48x512xf32> to vector<48xf32>
    %42 = vector.shape_cast %41 : vector<48xf32> to vector<48x1xf32>
    %cst_40 = arith.constant dense<0.000000e+00> : vector<1xf32>
    %43 = vector.multi_reduction <add>, %42, %cst_40 [0] : vector<48x1xf32> to vector<1xf32>
    %44 = vector.shape_cast %43 : vector<1xf32> to vector<1x1xf32>
    %45 = arith.addf %21, %44 : vector<1x1xf32>
    %c0_i32_41 = arith.constant 0 : i32
    %c1_i32_42 = arith.constant 1 : i32
    %c48_i32_43 = arith.constant 48 : i32
    %c0_i32_44 = arith.constant 0 : i32
    %46 = tpu.memref_slice %arg2[%arg0, %c48_i32_43, %c0_i32_44] : memref<1x96x512xf32, #tpu.memory_space<any>> -> memref<1x48x512xf32, #tpu.memory_space<any>>
    %47 = tpu.memref_squeeze %46 : memref<1x48x512xf32, #tpu.memory_space<any>> -> memref<48x512xf32, #tpu.memory_space<any>>
    %c48_i32_45 = arith.constant 48 : i32
    %c0_i32_46 = arith.constant 0 : i32
    %48 = tpu.memref_slice %arg5[%c48_i32_45, %c0_i32_46] : memref<96x512xf32, #tpu.memory_space<vmem>> -> memref<48x512xf32, #tpu.memory_space<vmem>>
    %49 = tpu.memref_slice %arg7[%c0_i32_41, %c1_i32_42] : memref<2x2x!tpu.dma_semaphore, #tpu.memory_space<semaphore_mem>> -> memref<1x1x!tpu.dma_semaphore, #tpu.memory_space<semaphore_mem>>
    %50 = tpu.memref_squeeze %49 : memref<1x1x!tpu.dma_semaphore, #tpu.memory_space<semaphore_mem>> -> memref<!tpu.dma_semaphore, #tpu.memory_space<semaphore_mem>>
    tpu.wait_dma2 semaphore(%50 : memref<!tpu.dma_semaphore, #tpu.memory_space<semaphore_mem>>) src(%47 : memref<48x512xf32, #tpu.memory_space<any>>) dst(%48 : memref<48x512xf32, #tpu.memory_space<vmem>>)
    %c1_i32_47 = arith.constant 1 : i32
    %c1_i32_48 = arith.constant 1 : i32
    %c48_i32_49 = arith.constant 48 : i32
    %c0_i32_50 = arith.constant 0 : i32
    %51 = tpu.memref_slice %arg3[%arg0, %c48_i32_49, %c0_i32_50] : memref<1x96x512xf32, #tpu.memory_space<any>> -> memref<1x48x512xf32, #tpu.memory_space<any>>
    %52 = tpu.memref_squeeze %51 : memref<1x48x512xf32, #tpu.memory_space<any>> -> memref<48x512xf32, #tpu.memory_space<any>>
    %c48_i32_51 = arith.constant 48 : i32
    %c0_i32_52 = arith.constant 0 : i32
    %53 = tpu.memref_slice %arg6[%c48_i32_51, %c0_i32_52] : memref<96x512xf32, #tpu.memory_space<vmem>> -> memref<48x512xf32, #tpu.memory_space<vmem>>
    %54 = tpu.memref_slice %arg7[%c1_i32_47, %c1_i32_48] : memref<2x2x!tpu.dma_semaphore, #tpu.memory_space<semaphore_mem>> -> memref<1x1x!tpu.dma_semaphore, #tpu.memory_space<semaphore_mem>>
    %55 = tpu.memref_squeeze %54 : memref<1x1x!tpu.dma_semaphore, #tpu.memory_space<semaphore_mem>> -> memref<!tpu.dma_semaphore, #tpu.memory_space<semaphore_mem>>
    tpu.wait_dma2 semaphore(%55 : memref<!tpu.dma_semaphore, #tpu.memory_space<semaphore_mem>>) src(%52 : memref<48x512xf32, #tpu.memory_space<any>>) dst(%53 : memref<48x512xf32, #tpu.memory_space<vmem>>)
    %c48 = arith.constant 48 : index
    %c0_53 = arith.constant 0 : index
    %56 = vector.load %arg5[%c48, %c0_53] : memref<96x512xf32, #tpu.memory_space<vmem>>, vector<48x512xf32>
    %c48_54 = arith.constant 48 : index
    %c0_55 = arith.constant 0 : index
    %57 = vector.load %arg6[%c48_54, %c0_55] : memref<96x512xf32, #tpu.memory_space<vmem>>, vector<48x512xf32>
    %58 = arith.mulf %56, %56 : vector<48x512xf32>
    %cst_56 = arith.constant dense<0.000000e+00> : vector<48xf32>
    %59 = vector.multi_reduction <add>, %58, %cst_56 [1] : vector<48x512xf32> to vector<48xf32>
    %60 = vector.shape_cast %59 : vector<48xf32> to vector<48x1xf32>
    %cst_57 = arith.constant dense<0.000000e+00> : vector<1xf32>
    %61 = vector.multi_reduction <add>, %60, %cst_57 [0] : vector<48x1xf32> to vector<1xf32>
    %62 = vector.shape_cast %61 : vector<1xf32> to vector<1x1xf32>
    %63 = arith.addf %39, %62 : vector<1x1xf32>
    %64 = arith.mulf %57, %57 : vector<48x512xf32>
    %cst_58 = arith.constant dense<0.000000e+00> : vector<48xf32>
    %65 = vector.multi_reduction <add>, %64, %cst_58 [1] : vector<48x512xf32> to vector<48xf32>
    %66 = vector.shape_cast %65 : vector<48xf32> to vector<48x1xf32>
    %cst_59 = arith.constant dense<0.000000e+00> : vector<1xf32>
    %67 = vector.multi_reduction <add>, %66, %cst_59 [0] : vector<48x1xf32> to vector<1xf32>
    %68 = vector.shape_cast %67 : vector<1xf32> to vector<1x1xf32>
    %69 = arith.addf %45, %68 : vector<1x1xf32>
    %70 = arith.divf %63, %69 : vector<1x1xf32>
    %71 = math.sqrt %70 : vector<1x1xf32>
    %c0_60 = arith.constant 0 : index
    %72 = memref.load %arg1[%c0_60] : memref<1xf32, #tpu.memory_space<smem>>
    %73 = vector.broadcast %72 : f32 to vector<1x1xf32>
    %74 = arith.mulf %71, %73 : vector<1x1xf32>
    %c0_61 = arith.constant 0 : index
    %c0_62 = arith.constant 0 : index
    %75 = vector.load %arg5[%c0_61, %c0_62] : memref<96x512xf32, #tpu.memory_space<vmem>>, vector<48x512xf32>
    %c0_63 = arith.constant 0 : index
    %c0_64 = arith.constant 0 : index
    %76 = vector.load %arg6[%c0_63, %c0_64] : memref<96x512xf32, #tpu.memory_space<vmem>>, vector<48x512xf32>
    %77 = vector.broadcast %74 : vector<1x1xf32> to vector<48x512xf32>
    %78 = arith.mulf %77, %76 : vector<48x512xf32>
    %79 = arith.addf %75, %78 : vector<48x512xf32>
    %c0_65 = arith.constant 0 : index
    %c0_66 = arith.constant 0 : index
    %80 = vector.load %arg5[%c0_65, %c0_66] : memref<96x512xf32, #tpu.memory_space<vmem>>, vector<48x512xf32>
    tpu.vector_store %arg5[%c0_65, %c0_66], %79 {strides = array<i32>} : memref<96x512xf32, #tpu.memory_space<vmem>>, vector<48x512xf32>,
    %c0_i32_67 = arith.constant 0 : i32
    %c0_i32_68 = arith.constant 0 : i32
    %c0_i32_69 = arith.constant 0 : i32
    %81 = tpu.memref_slice %arg5[%c0_i32_68, %c0_i32_69] : memref<96x512xf32, #tpu.memory_space<vmem>> -> memref<48x512xf32, #tpu.memory_space<vmem>>
    %c0_i32_70 = arith.constant 0 : i32
    %c0_i32_71 = arith.constant 0 : i32
    %82 = tpu.memref_slice %arg4[%arg0, %c0_i32_70, %c0_i32_71] : memref<1x96x512xf32, #tpu.memory_space<any>> -> memref<1x48x512xf32, #tpu.memory_space<any>>
    %83 = tpu.memref_squeeze %82 : memref<1x48x512xf32, #tpu.memory_space<any>> -> memref<48x512xf32, #tpu.memory_space<any>>
    %84 = tpu.memref_slice %arg8[%c0_i32_67] : memref<2x!tpu.dma_semaphore, #tpu.memory_space<semaphore_mem>> -> memref<1x!tpu.dma_semaphore, #tpu.memory_space<semaphore_mem>>
    %85 = tpu.memref_squeeze %84 : memref<1x!tpu.dma_semaphore, #tpu.memory_space<semaphore_mem>> -> memref<!tpu.dma_semaphore, #tpu.memory_space<semaphore_mem>>
    tpu.enqueue_dma source(%81 : memref<48x512xf32, #tpu.memory_space<vmem>>) target(%83 : memref<48x512xf32, #tpu.memory_space<any>>) target_semaphore(%85 : memref<!tpu.dma_semaphore, #tpu.memory_space<semaphore_mem>>)
    %c48_72 = arith.constant 48 : index
    %c0_73 = arith.constant 0 : index
    %86 = vector.load %arg5[%c48_72, %c0_73] : memref<96x512xf32, #tpu.memory_space<vmem>>, vector<48x512xf32>
    %c48_74 = arith.constant 48 : index
    %c0_75 = arith.constant 0 : index
    %87 = vector.load %arg6[%c48_74, %c0_75] : memref<96x512xf32, #tpu.memory_space<vmem>>, vector<48x512xf32>
    %88 = vector.broadcast %74 : vector<1x1xf32> to vector<48x512xf32>
    %89 = arith.mulf %88, %87 : vector<48x512xf32>
    %90 = arith.addf %86, %89 : vector<48x512xf32>
    %c48_76 = arith.constant 48 : index
    %c0_77 = arith.constant 0 : index
    %91 = vector.load %arg5[%c48_76, %c0_77] : memref<96x512xf32, #tpu.memory_space<vmem>>, vector<48x512xf32>
    tpu.vector_store %arg5[%c48_76, %c0_77], %90 {strides = array<i32>} : memref<96x512xf32, #tpu.memory_space<vmem>>, vector<48x512xf32>,
    %c1_i32_78 = arith.constant 1 : i32
    %c48_i32_79 = arith.constant 48 : i32
    %c0_i32_80 = arith.constant 0 : i32
    %92 = tpu.memref_slice %arg5[%c48_i32_79, %c0_i32_80] : memref<96x512xf32, #tpu.memory_space<vmem>> -> memref<48x512xf32, #tpu.memory_space<vmem>>
    %c48_i32_81 = arith.constant 48 : i32
    %c0_i32_82 = arith.constant 0 : i32
    %93 = tpu.memref_slice %arg4[%arg0, %c48_i32_81, %c0_i32_82] : memref<1x96x512xf32, #tpu.memory_space<any>> -> memref<1x48x512xf32, #tpu.memory_space<any>>
    %94 = tpu.memref_squeeze %93 : memref<1x48x512xf32, #tpu.memory_space<any>> -> memref<48x512xf32, #tpu.memory_space<any>>
    %95 = tpu.memref_slice %arg8[%c1_i32_78] : memref<2x!tpu.dma_semaphore, #tpu.memory_space<semaphore_mem>> -> memref<1x!tpu.dma_semaphore, #tpu.memory_space<semaphore_mem>>
    %96 = tpu.memref_squeeze %95 : memref<1x!tpu.dma_semaphore, #tpu.memory_space<semaphore_mem>> -> memref<!tpu.dma_semaphore, #tpu.memory_space<semaphore_mem>>
    tpu.enqueue_dma source(%92 : memref<48x512xf32, #tpu.memory_space<vmem>>) target(%94 : memref<48x512xf32, #tpu.memory_space<any>>) target_semaphore(%96 : memref<!tpu.dma_semaphore, #tpu.memory_space<semaphore_mem>>)
    %c0_i32_83 = arith.constant 0 : i32
    %c0_i32_84 = arith.constant 0 : i32
    %c0_i32_85 = arith.constant 0 : i32
    %97 = tpu.memref_slice %arg5[%c0_i32_84, %c0_i32_85] : memref<96x512xf32, #tpu.memory_space<vmem>> -> memref<48x512xf32, #tpu.memory_space<vmem>>
    %c0_i32_86 = arith.constant 0 : i32
    %c0_i32_87 = arith.constant 0 : i32
    %98 = tpu.memref_slice %arg4[%arg0, %c0_i32_86, %c0_i32_87] : memref<1x96x512xf32, #tpu.memory_space<any>> -> memref<1x48x512xf32, #tpu.memory_space<any>>
    %99 = tpu.memref_squeeze %98 : memref<1x48x512xf32, #tpu.memory_space<any>> -> memref<48x512xf32, #tpu.memory_space<any>>
    %100 = tpu.memref_slice %arg8[%c0_i32_83] : memref<2x!tpu.dma_semaphore, #tpu.memory_space<semaphore_mem>> -> memref<1x!tpu.dma_semaphore, #tpu.memory_space<semaphore_mem>>
    %101 = tpu.memref_squeeze %100 : memref<1x!tpu.dma_semaphore, #tpu.memory_space<semaphore_mem>> -> memref<!tpu.dma_semaphore, #tpu.memory_space<semaphore_mem>>
    tpu.wait_dma2 semaphore(%101 : memref<!tpu.dma_semaphore, #tpu.memory_space<semaphore_mem>>) src(%97 : memref<48x512xf32, #tpu.memory_space<vmem>>) dst(%99 : memref<48x512xf32, #tpu.memory_space<any>>)
    %c1_i32_88 = arith.constant 1 : i32
    %c48_i32_89 = arith.constant 48 : i32
    %c0_i32_90 = arith.constant 0 : i32
    %102 = tpu.memref_slice %arg5[%c48_i32_89, %c0_i32_90] : memref<96x512xf32, #tpu.memory_space<vmem>> -> memref<48x512xf32, #tpu.memory_space<vmem>>
    %c48_i32_91 = arith.constant 48 : i32
    %c0_i32_92 = arith.constant 0 : i32
    %103 = tpu.memref_slice %arg4[%arg0, %c48_i32_91, %c0_i32_92] : memref<1x96x512xf32, #tpu.memory_space<any>> -> memref<1x48x512xf32, #tpu.memory_space<any>>
    %104 = tpu.memref_squeeze %103 : memref<1x48x512xf32, #tpu.memory_space<any>> -> memref<48x512xf32, #tpu.memory_space<any>>
    %105 = tpu.memref_slice %arg8[%c1_i32_88] : memref<2x!tpu.dma_semaphore, #tpu.memory_space<semaphore_mem>> -> memref<1x!tpu.dma_semaphore, #tpu.memory_space<semaphore_mem>>
    %106 = tpu.memref_squeeze %105 : memref<1x!tpu.dma_semaphore, #tpu.memory_space<semaphore_mem>> -> memref<!tpu.dma_semaphore, #tpu.memory_space<semaphore_mem>>
    tpu.wait_dma2 semaphore(%106 : memref<!tpu.dma_semaphore, #tpu.memory_space<semaphore_mem>>) src(%102 : memref<48x512xf32, #tpu.memory_space<vmem>>) dst(%104 : memref<48x512xf32, #tpu.memory_space<any>>)
    return
  }
  func.func @transform_0(%arg0: i32) -> i32 {
    %c0_i32 = arith.constant 0 : i32
    %c0_i32_0 = arith.constant 0 : i32
    return %c0_i32 : i32
  }
}

</mosaic_0001>

<llo_original>
// kernel: _add_noise_tc.1
$region0: #{_add_noise_tc.1}
  #allocation0 [shape = 'u32[]', space=smem, size = 0x4, offset = 0x4, fixed_abs, tag = 'smem constant byte address 0x4 - core index']
  #allocation1 [shape = 'u32[144,128]{1,0:T(1,128)}', space=vmem, size = 0x12000, scoped, tag = 'internal scratch']
  #allocation2 [shape = 'f32[96,512]{1,0:T(8,128)}', space=vmem, size = 0x30000, scoped, tag = 'scratch operand']
  #allocation3 [shape = 'f32[96,512]{1,0:T(8,128)}', space=vmem, size = 0x30000, scoped, tag = 'scratch operand']
  #allocation4 [shape = 's32[4]{0}', space=sflag, size = 0x10, scoped, tag = 'scratch operand']
  #allocation5 [shape = 's32[2]{0}', space=sflag, size = 0x8, scoped, tag = 'scratch operand']
  #allocation6 [shape = 'f32[1]{0:T(128)S(6)}', space=smem, size = 0x200, scoped, tag = 'scoped memory for _add_noise_tc.1']
  #allocation7 [shape = 's32[]', space=sflag, size = 0x4, offset = 0, fixed_abs, tag = 'sflag constant byte address 0x0 - dummy sync flag']
  #allocation8 [shape = 's32[]', space=sflag, size = 0x4, offset = 0, fixed_abs, tag = 'sflag constant byte address 0x0 - dummy sync flag']
  #allocation9 [shape = 's32[]', space=sflag, size = 0x4, offset = 0, fixed_abs, tag = 'sflag constant byte address 0x0 - dummy sync flag']
  #allocation10 [shape = 's32[]', space=sflag, size = 0x4, offset = 0, fixed_abs, tag = 'sflag constant byte address 0x0 - dummy sync flag']
  #allocation11 [shape = 's32[]', space=sflag, size = 0x4, offset = 0, fixed_abs, tag = 'sflag constant byte address 0x0 - dummy sync flag']
  #allocation12 [shape = 's32[]', space=sflag, size = 0x4, offset = 0, fixed_abs, tag = 'sflag constant byte address 0x0 - dummy sync flag']
  %s0 = inlined_call_operand.<no memory space> [shape: f32[1], index: 0, kind: input, shape index: {}]
  %s1 = inlined_call_operand.vmem [shape: f32[1,96,512], index: 1, kind: input, shape index: {}]
  %s2 = inlined_call_operand.vmem [shape: f32[1,96,512], index: 2, kind: input, shape index: {}]
  %s3 = inlined_call_operand.vmem [shape: f32[1,96,512], index: 3, kind: output, shape index: {}]
  %s4 = sld [smem:[#allocation0]]
  $region210: #{_add_noise_tc.1} parent=0
    _
  %s6 = ssub.s32 1, %s4
  %s7 = scalar_select 0, %s6, %s4
  %8 = sst [smem:[#allocation6]] %s0
  // Predicated region
  $region2: #{_add_noise_tc.1} parent=0 // pred_check
    _
  $region3: #{_add_noise_tc.1} parent=0 // pred_check_branch
    %10 = sbr.rel (0) target = $region5
  $region4: #{_add_noise_tc.1} parent=0 // pred_region
    _
  $region5: #{_add_noise_tc.1} parent=0 // pred_fallthru
    _
  %s11 = smul.u32 0, 48
  %s12 = smul.addr %s11, 8
  %s13 = scalar_lea.vmem %s1, %s12
  %p15 = scmp.lt.u32.totalorder 192, 8
  %p16 = pneg %p15
  // Predicated region
  $region6: #{_add_noise_tc.1} parent=0 // pred_check
    _
  $region7: #{_add_noise_tc.1} parent=0 // pred_check_branch
    %18 = sbr.rel (%p15) target = $region9
  $region8: #{_add_noise_tc.1} parent=0 // pred_region
    %s34 = sand.u32 192, 7
    %p35 = scmp.eq.s32.totalorder %s34, 0
    // Predicated region
    $region21: #{_add_noise_tc.1} parent=8 // pred_check
      %p36 = pneg %p35
    $region22: #{_add_noise_tc.1} parent=8 // pred_check_branch
      %38 = sbr.rel (%p36) target = $region24
    $region23: #{_add_noise_tc.1} parent=8 // pred_region
      loop: start=0, step=1, limit=1
      $region25: #{_add_noise_tc.1} parent=23 // loop_pre_header
        _
      $region26: #{_add_noise_tc.1} parent=23 // loop_header
        %s40 = sphi 0, %s44
        %p41 = scmp.ge.s32.totalorder %s40, 1
        %s45 = sphi %s13, %s13
        %s46 = sphi [#allocation2], [#allocation2]
      $region27: #{_add_noise_tc.1} parent=23 // loop_header_branch
        %43 = sbr.rel (%p41) target = $region31
      $region28: #{_add_noise_tc.1} parent=23 // loop_body
        %v47 = vld [vmem:[%s45] sm:$0xff]
        %48 = vst [vmem:[%s46] sm:$0xff] %v47
        %v49 = vld [vmem:[%s45 + $0x8] sm:$0xff]
        %50 = vst [vmem:[%s46 + $0x8] sm:$0xff] %v49
        %v51 = vld [vmem:[%s45 + $0x10] sm:$0xff]
        %52 = vst [vmem:[%s46 + $0x10] sm:$0xff] %v51
        %v53 = vld [vmem:[%s45 + $0x18] sm:$0xff]
        %54 = vst [vmem:[%s46 + $0x18] sm:$0xff] %v53
        %v55 = vld [vmem:[%s45 + $0x20] sm:$0xff]
        %56 = vst [vmem:[%s46 + $0x20] sm:$0xff] %v55
        %v57 = vld [vmem:[%s45 + $0x28] sm:$0xff]
        %58 = vst [vmem:[%s46 + $0x28] sm:$0xff] %v57
        %v59 = vld [vmem:[%s45 + $0x30] sm:$0xff]
        %60 = vst [vmem:[%s46 + $0x30] sm:$0xff] %v59
        %v61 = vld [vmem:[%s45 + $0x38] sm:$0xff]
        %62 = vst [vmem:[%s46 + $0x38] sm:$0xff] %v61
        %v63 = vld [vmem:[%s45 + $0x40] sm:$0xff]
        %64 = vst [vmem:[%s46 + $0x40] sm:$0xff] %v63
        %v65 = vld [vmem:[%s45 + $0x48] sm:$0xff]
        %66 = vst [vmem:[%s46 + $0x48] sm:$0xff] %v65
        %v67 = vld [vmem:[%s45 + $0x50] sm:$0xff]
        %68 = vst [vmem:[%s46 + $0x50] sm:$0xff] %v67
        %v69 = vld [vmem:[%s45 + $0x58] sm:$0xff]
        %70 = vst [vmem:[%s46 + $0x58] sm:$0xff] %v69
        %v71 = vld [vmem:[%s45 + $0x60] sm:$0xff]
        %72 = vst [vmem:[%s46 + $0x60] sm:$0xff] %v71
        %v73 = vld [vmem:[%s45 + $0x68] sm:$0xff]
        %74 = vst [vmem:[%s46 + $0x68] sm:$0xff] %v73
        %v75 = vld [vmem:[%s45 + $0x70] sm:$0xff]
        %76 = vst [vmem:[%s46 + $0x70] sm:$0xff] %v75
        %v77 = vld [vmem:[%s45 + $0x78] sm:$0xff]
        %78 = vst [vmem:[%s46 + $0x78] sm:$0xff] %v77
        %v79 = vld [vmem:[%s45 + $0x80] sm:$0xff]
        %80 = vst [vmem:[%s46 + $0x80] sm:$0xff] %v79
        %v81 = vld [vmem:[%s45 + $0x88] sm:$0xff]
        %82 = vst [vmem:[%s46 + $0x88] sm:$0xff] %v81
        %v83 = vld [vmem:[%s45 + $0x90] sm:$0xff]
        %84 = vst [vmem:[%s46 + $0x90] sm:$0xff] %v83
        %v85 = vld [vmem:[%s45 + $0x98] sm:$0xff]
        %86 = vst [vmem:[%s46 + $0x98] sm:$0xff] %v85
        %v87 = vld [vmem:[%s45 + $0xa0] sm:$0xff]
        %88 = vst [vmem:[%s46 + $0xa0] sm:$0xff] %v87
        %v89 = vld [vmem:[%s45 + $0xa8] sm:$0xff]
        %90 = vst [vmem:[%s46 + $0xa8] sm:$0xff] %v89
        %v91 = vld [vmem:[%s45 + $0xb0] sm:$0xff]
        %92 = vst [vmem:[%s46 + $0xb0] sm:$0xff] %v91
        %v93 = vld [vmem:[%s45 + $0xb8] sm:$0xff]
        %94 = vst [vmem:[%s46 + $0xb8] sm:$0xff] %v93
      $region29: #{_add_noise_tc.1} parent=23 // loop_footer
        %s44 = sadd.s32 1, %s40
      $region30: #{_add_noise_tc.1} parent=23 // loop_footer_branch
        %39 = sbr.rel target = $region26
      $region31: #{_add_noise_tc.1} parent=23 // loop_exit
        _
    $region24: #{_add_noise_tc.1} parent=8 // pred_fallthru
      _
    %p95 = pneg %p35
    // Predicated region
    $region32: #{_add_noise_tc.1} parent=8 // pred_check
      _
    $region33: #{_add_noise_tc.1} parent=8 // pred_check_branch
      %97 = sbr.rel (%p35) target = $region35
    $region34: #{_add_noise_tc.1} parent=8 // pred_region
      %s98 = sand.u32 192, 7
    $region35: #{_add_noise_tc.1} parent=8 // pred_fallthru
      _
  $region9: #{_add_noise_tc.1} parent=0 // pred_fallthru
    _
  // Predicated region
  $region10: #{_add_noise_tc.1} parent=0 // pred_check
    %p19 = pneg %p15
  $region11: #{_add_noise_tc.1} parent=0 // pred_check_branch
    %21 = sbr.rel (%p19) target = $region13
  $region12: #{_add_noise_tc.1} parent=0 // pred_region
    %s22 = sshll.u32 1, 192
    %s23 = ssub.s32 %s22, 1
    loop: start=0, step=1, limit=1
    $region14: #{_add_noise_tc.1} parent=12 // loop_pre_header
      _
    $region15: #{_add_noise_tc.1} parent=12 // loop_header
      %s25 = sphi 0, %s29
      %p26 = scmp.ge.s32.totalorder %s25, 1
      %s30 = sphi %s13, %s13
      %s31 = sphi [#allocation2], [#allocation2]
    $region16: #{_add_noise_tc.1} parent=12 // loop_header_branch
      %28 = sbr.rel (%p26) target = $region20
    $region17: #{_add_noise_tc.1} parent=12 // loop_body
      %v32 = vld [vmem:[%s30] sm:%s23]
      %33 = vst [vmem:[%s31] sm:%s23] %v32
    $region18: #{_add_noise_tc.1} parent=12 // loop_footer
      %s29 = sadd.s32 1, %s25
    $region19: #{_add_noise_tc.1} parent=12 // loop_footer_branch
      %24 = sbr.rel target = $region15
    $region20: #{_add_noise_tc.1} parent=12 // loop_exit
      _
  $region13: #{_add_noise_tc.1} parent=0 // pred_fallthru
    _
  // Predicated region
  $region36: #{_add_noise_tc.1} parent=0 // pred_check
    _
  $region37: #{_add_noise_tc.1} parent=0 // pred_check_branch
    %101 = sbr.rel (0) target = $region39
  $region38: #{_add_noise_tc.1} parent=0 // pred_region
    %102 = vsyncadd [#allocation4], 3072
  $region39: #{_add_noise_tc.1} parent=0 // pred_fallthru
    _
  %s103 = smul.addr %s11, 8
  %s104 = scalar_lea.vmem %s2, %s103
  %s105 = scalar_lea.sflag [#allocation4], 2
  %p107 = scmp.lt.u32.totalorder 192, 8
  %p108 = pneg %p107
  // Predicated region
  $region40: #{_add_noise_tc.1} parent=0 // pred_check
    _
  $region41: #{_add_noise_tc.1} parent=0 // pred_check_branch
    %110 = sbr.rel (%p107) target = $region43
  $region42: #{_add_noise_tc.1} parent=0 // pred_region
    %s126 = sand.u32 192, 7
    %p127 = scmp.eq.s32.totalorder %s126, 0
    // Predicated region
    $region55: #{_add_noise_tc.1} parent=42 // pred_check
      %p128 = pneg %p127
    $region56: #{_add_noise_tc.1} parent=42 // pred_check_branch
      %130 = sbr.rel (%p128) target = $region58
    $region57: #{_add_noise_tc.1} parent=42 // pred_region
      loop: start=0, step=1, limit=1
      $region59: #{_add_noise_tc.1} parent=57 // loop_pre_header
        _
      $region60: #{_add_noise_tc.1} parent=57 // loop_header
        %s132 = sphi 0, %s136
        %p133 = scmp.ge.s32.totalorder %s132, 1
        %s137 = sphi %s104, %s104
        %s138 = sphi [#allocation3], [#allocation3]
      $region61: #{_add_noise_tc.1} parent=57 // loop_header_branch
        %135 = sbr.rel (%p133) target = $region65
      $region62: #{_add_noise_tc.1} parent=57 // loop_body
        %v139 = vld [vmem:[%s137] sm:$0xff]
        %140 = vst [vmem:[%s138] sm:$0xff] %v139
        %v141 = vld [vmem:[%s137 + $0x8] sm:$0xff]
        %142 = vst [vmem:[%s138 + $0x8] sm:$0xff] %v141
        %v143 = vld [vmem:[%s137 + $0x10] sm:$0xff]
        %144 = vst [vmem:[%s138 + $0x10] sm:$0xff] %v143
        %v145 = vld [vmem:[%s137 + $0x18] sm:$0xff]
        %146 = vst [vmem:[%s138 + $0x18] sm:$0xff] %v145
        %v147 = vld [vmem:[%s137 + $0x20] sm:$0xff]
        %148 = vst [vmem:[%s138 + $0x20] sm:$0xff] %v147
        %v149 = vld [vmem:[%s137 + $0x28] sm:$0xff]
        %150 = vst [vmem:[%s138 + $0x28] sm:$0xff] %v149
        %v151 = vld [vmem:[%s137 + $0x30] sm:$0xff]
        %152 = vst [vmem:[%s138 + $0x30] sm:$0xff] %v151
        %v153 = vld [vmem:[%s137 + $0x38] sm:$0xff]
        %154 = vst [vmem:[%s138 + $0x38] sm:$0xff] %v153
        %v155 = vld [vmem:[%s137 + $0x40] sm:$0xff]
        %156 = vst [vmem:[%s138 + $0x40] sm:$0xff] %v155
        %v157 = vld [vmem:[%s137 + $0x48] sm:$0xff]
        %158 = vst [vmem:[%s138 + $0x48] sm:$0xff] %v157
        %v159 = vld [vmem:[%s137 + $0x50] sm:$0xff]
        %160 = vst [vmem:[%s138 + $0x50] sm:$0xff] %v159
        %v161 = vld [vmem:[%s137 + $0x58] sm:$0xff]
        %162 = vst [vmem:[%s138 + $0x58] sm:$0xff] %v161
        %v163 = vld [vmem:[%s137 + $0x60] sm:$0xff]
        %164 = vst [vmem:[%s138 + $0x60] sm:$0xff] %v163
        %v165 = vld [vmem:[%s137 + $0x68] sm:$0xff]
        %166 = vst [vmem:[%s138 + $0x68] sm:$0xff] %v165
        %v167 = vld [vmem:[%s137 + $0x70] sm:$0xff]
        %168 = vst [vmem:[%s138 + $0x70] sm:$0xff] %v167
        %v169 = vld [vmem:[%s137 + $0x78] sm:$0xff]
        %170 = vst [vmem:[%s138 + $0x78] sm:$0xff] %v169
        %v171 = vld [vmem:[%s137 + $0x80] sm:$0xff]
        %172 = vst [vmem:[%s138 + $0x80] sm:$0xff] %v171
        %v173 = vld [vmem:[%s137 + $0x88] sm:$0xff]
        %174 = vst [vmem:[%s138 + $0x88] sm:$0xff] %v173
        %v175 = vld [vmem:[%s137 + $0x90] sm:$0xff]
        %176 = vst [vmem:[%s138 + $0x90] sm:$0xff] %v175
        %v177 = vld [vmem:[%s137 + $0x98] sm:$0xff]
        %178 = vst [vmem:[%s138 + $0x98] sm:$0xff] %v177
        %v179 = vld [vmem:[%s137 + $0xa0] sm:$0xff]
        %180 = vst [vmem:[%s138 + $0xa0] sm:$0xff] %v179
        %v181 = vld [vmem:[%s137 + $0xa8] sm:$0xff]
        %182 = vst [vmem:[%s138 + $0xa8] sm:$0xff] %v181
        %v183 = vld [vmem:[%s137 + $0xb0] sm:$0xff]
        %184 = vst [vmem:[%s138 + $0xb0] sm:$0xff] %v183
        %v185 = vld [vmem:[%s137 + $0xb8] sm:$0xff]
        %186 = vst [vmem:[%s138 + $0xb8] sm:$0xff] %v185
      $region63: #{_add_noise_tc.1} parent=57 // loop_footer
        %s136 = sadd.s32 1, %s132
      $region64: #{_add_noise_tc.1} parent=57 // loop_footer_branch
        %131 = sbr.rel target = $region60
      $region65: #{_add_noise_tc.1} parent=57 // loop_exit
        _
    $region58: #{_add_noise_tc.1} parent=42 // pred_fallthru
      _
    %p187 = pneg %p127
    // Predicated region
    $region66: #{_add_noise_tc.1} parent=42 // pred_check
      _
    $region67: #{_add_noise_tc.1} parent=42 // pred_check_branch
      %189 = sbr.rel (%p127) target = $region69
    $region68: #{_add_noise_tc.1} parent=42 // pred_region
      %s190 = sand.u32 192, 7
    $region69: #{_add_noise_tc.1} parent=42 // pred_fallthru
      _
  $region43: #{_add_noise_tc.1} parent=0 // pred_fallthru
    _
  // Predicated region
  $region44: #{_add_noise_tc.1} parent=0 // pred_check
    %p111 = pneg %p107
  $region45: #{_add_noise_tc.1} parent=0 // pred_check_branch
    %113 = sbr.rel (%p111) target = $region47
  $region46: #{_add_noise_tc.1} parent=0 // pred_region
    %s114 = sshll.u32 1, 192
    %s115 = ssub.s32 %s114, 1
    loop: start=0, step=1, limit=1
    $region48: #{_add_noise_tc.1} parent=46 // loop_pre_header
      _
    $region49: #{_add_noise_tc.1} parent=46 // loop_header
      %s117 = sphi 0, %s121
      %p118 = scmp.ge.s32.totalorder %s117, 1
      %s122 = sphi %s104, %s104
      %s123 = sphi [#allocation3], [#allocation3]
    $region50: #{_add_noise_tc.1} parent=46 // loop_header_branch
      %120 = sbr.rel (%p118) target = $region54
    $region51: #{_add_noise_tc.1} parent=46 // loop_body
      %v124 = vld [vmem:[%s122] sm:%s115]
      %125 = vst [vmem:[%s123] sm:%s115] %v124
    $region52: #{_add_noise_tc.1} parent=46 // loop_footer
      %s121 = sadd.s32 1, %s117
    $region53: #{_add_noise_tc.1} parent=46 // loop_footer_branch
      %116 = sbr.rel target = $region49
    $region54: #{_add_noise_tc.1} parent=46 // loop_exit
      _
  $region47: #{_add_noise_tc.1} parent=0 // pred_fallthru
    _
  // Predicated region
  $region70: #{_add_noise_tc.1} parent=0 // pred_check
    _
  $region71: #{_add_noise_tc.1} parent=0 // pred_check_branch
    %193 = sbr.rel (0) target = $region73
  $region72: #{_add_noise_tc.1} parent=0 // pred_region
    %194 = vsyncadd %s105, 3072
  $region73: #{_add_noise_tc.1} parent=0 // pred_fallthru
    _
  %s195 = sadd.s32 24, %s11
  %s196 = smul.addr %s195, 8
  %s197 = scalar_lea.vmem %s1, %s196
  %s198 = scalar_lea.vmem [#allocation2], 192
  %s199 = scalar_lea.sflag [#allocation4], 1
  %p201 = scmp.lt.u32.totalorder 192, 8
  %p202 = pneg %p201
  // Predicated region
  $region74: #{_add_noise_tc.1} parent=0 // pred_check
    _
  $region75: #{_add_noise_tc.1} parent=0 // pred_check_branch
    %204 = sbr.rel (%p201) target = $region77
  $region76: #{_add_noise_tc.1} parent=0 // pred_region
    %s220 = sand.u32 192, 7
    %p221 = scmp.eq.s32.totalorder %s220, 0
    // Predicated region
    $region89: #{_add_noise_tc.1} parent=76 // pred_check
      %p222 = pneg %p221
    $region90: #{_add_noise_tc.1} parent=76 // pred_check_branch
      %224 = sbr.rel (%p222) target = $region92
    $region91: #{_add_noise_tc.1} parent=76 // pred_region
      loop: start=0, step=1, limit=1
      $region93: #{_add_noise_tc.1} parent=91 // loop_pre_header
        _
      $region94: #{_add_noise_tc.1} parent=91 // loop_header
        %s226 = sphi 0, %s230
        %p227 = scmp.ge.s32.totalorder %s226, 1
        %s231 = sphi %s197, %s197
        %s232 = sphi %s198, %s198
      $region95: #{_add_noise_tc.1} parent=91 // loop_header_branch
        %229 = sbr.rel (%p227) target = $region99
      $region96: #{_add_noise_tc.1} parent=91 // loop_body
        %v233 = vld [vmem:[%s231] sm:$0xff]
        %234 = vst [vmem:[%s232] sm:$0xff] %v233
        %v235 = vld [vmem:[%s231 + $0x8] sm:$0xff]
        %236 = vst [vmem:[%s232 + $0x8] sm:$0xff] %v235
        %v237 = vld [vmem:[%s231 + $0x10] sm:$0xff]
        %238 = vst [vmem:[%s232 + $0x10] sm:$0xff] %v237
        %v239 = vld [vmem:[%s231 + $0x18] sm:$0xff]
        %240 = vst [vmem:[%s232 + $0x18] sm:$0xff] %v239
        %v241 = vld [vmem:[%s231 + $0x20] sm:$0xff]
        %242 = vst [vmem:[%s232 + $0x20] sm:$0xff] %v241
        %v243 = vld [vmem:[%s231 + $0x28] sm:$0xff]
        %244 = vst [vmem:[%s232 + $0x28] sm:$0xff] %v243
        %v245 = vld [vmem:[%s231 + $0x30] sm:$0xff]
        %246 = vst [vmem:[%s232 + $0x30] sm:$0xff] %v245
        %v247 = vld [vmem:[%s231 + $0x38] sm:$0xff]
        %248 = vst [vmem:[%s232 + $0x38] sm:$0xff] %v247
        %v249 = vld [vmem:[%s231 + $0x40] sm:$0xff]
        %250 = vst [vmem:[%s232 + $0x40] sm:$0xff] %v249
        %v251 = vld [vmem:[%s231 + $0x48] sm:$0xff]
        %252 = vst [vmem:[%s232 + $0x48] sm:$0xff] %v251
        %v253 = vld [vmem:[%s231 + $0x50] sm:$0xff]
        %254 = vst [vmem:[%s232 + $0x50] sm:$0xff] %v253
        %v255 = vld [vmem:[%s231 + $0x58] sm:$0xff]
        %256 = vst [vmem:[%s232 + $0x58] sm:$0xff] %v255
        %v257 = vld [vmem:[%s231 + $0x60] sm:$0xff]
        %258 = vst [vmem:[%s232 + $0x60] sm:$0xff] %v257
        %v259 = vld [vmem:[%s231 + $0x68] sm:$0xff]
        %260 = vst [vmem:[%s232 + $0x68] sm:$0xff] %v259
        %v261 = vld [vmem:[%s231 + $0x70] sm:$0xff]
        %262 = vst [vmem:[%s232 + $0x70] sm:$0xff] %v261
        %v263 = vld [vmem:[%s231 + $0x78] sm:$0xff]
        %264 = vst [vmem:[%s232 + $0x78] sm:$0xff] %v263
        %v265 = vld [vmem:[%s231 + $0x80] sm:$0xff]
        %266 = vst [vmem:[%s232 + $0x80] sm:$0xff] %v265
        %v267 = vld [vmem:[%s231 + $0x88] sm:$0xff]
        %268 = vst [vmem:[%s232 + $0x88] sm:$0xff] %v267
        %v269 = vld [vmem:[%s231 + $0x90] sm:$0xff]
        %270 = vst [vmem:[%s232 + $0x90] sm:$0xff] %v269
        %v271 = vld [vmem:[%s231 + $0x98] sm:$0xff]
        %272 = vst [vmem:[%s232 + $0x98] sm:$0xff] %v271
        %v273 = vld [vmem:[%s231 + $0xa0] sm:$0xff]
        %274 = vst [vmem:[%s232 + $0xa0] sm:$0xff] %v273
        %v275 = vld [vmem:[%s231 + $0xa8] sm:$0xff]
        %276 = vst [vmem:[%s232 + $0xa8] sm:$0xff] %v275
        %v277 = vld [vmem:[%s231 + $0xb0] sm:$0xff]
        %278 = vst [vmem:[%s232 + $0xb0] sm:$0xff] %v277
        %v279 = vld [vmem:[%s231 + $0xb8] sm:$0xff]
        %280 = vst [vmem:[%s232 + $0xb8] sm:$0xff] %v279
      $region97: #{_add_noise_tc.1} parent=91 // loop_footer
        %s230 = sadd.s32 1, %s226
      $region98: #{_add_noise_tc.1} parent=91 // loop_footer_branch
        %225 = sbr.rel target = $region94
      $region99: #{_add_noise_tc.1} parent=91 // loop_exit
        _
    $region92: #{_add_noise_tc.1} parent=76 // pred_fallthru
      _
    %p281 = pneg %p221
    // Predicated region
    $region100: #{_add_noise_tc.1} parent=76 // pred_check
      _
    $region101: #{_add_noise_tc.1} parent=76 // pred_check_branch
      %283 = sbr.rel (%p221) target = $region103
    $region102: #{_add_noise_tc.1} parent=76 // pred_region
      %s284 = sand.u32 192, 7
    $region103: #{_add_noise_tc.1} parent=76 // pred_fallthru
      _
  $region77: #{_add_noise_tc.1} parent=0 // pred_fallthru
    _
  // Predicated region
  $region78: #{_add_noise_tc.1} parent=0 // pred_check
    %p205 = pneg %p201
  $region79: #{_add_noise_tc.1} parent=0 // pred_check_branch
    %207 = sbr.rel (%p205) target = $region81
  $region80: #{_add_noise_tc.1} parent=0 // pred_region
    %s208 = sshll.u32 1, 192
    %s209 = ssub.s32 %s208, 1
    loop: start=0, step=1, limit=1
    $region82: #{_add_noise_tc.1} parent=80 // loop_pre_header
      _
    $region83: #{_add_noise_tc.1} parent=80 // loop_header
      %s211 = sphi 0, %s215
      %p212 = scmp.ge.s32.totalorder %s211, 1
      %s216 = sphi %s197, %s197
      %s217 = sphi %s198, %s198
    $region84: #{_add_noise_tc.1} parent=80 // loop_header_branch
      %214 = sbr.rel (%p212) target = $region88
    $region85: #{_add_noise_tc.1} parent=80 // loop_body
      %v218 = vld [vmem:[%s216] sm:%s209]
      %219 = vst [vmem:[%s217] sm:%s209] %v218
    $region86: #{_add_noise_tc.1} parent=80 // loop_footer
      %s215 = sadd.s32 1, %s211
    $region87: #{_add_noise_tc.1} parent=80 // loop_footer_branch
      %210 = sbr.rel target = $region83
    $region88: #{_add_noise_tc.1} parent=80 // loop_exit
      _
  $region81: #{_add_noise_tc.1} parent=0 // pred_fallthru
    _
  // Predicated region
  $region104: #{_add_noise_tc.1} parent=0 // pred_check
    _
  $region105: #{_add_noise_tc.1} parent=0 // pred_check_branch
    %287 = sbr.rel (0) target = $region107
  $region106: #{_add_noise_tc.1} parent=0 // pred_region
    %288 = vsyncadd %s199, 3072
  $region107: #{_add_noise_tc.1} parent=0 // pred_fallthru
    _
  %s289 = smul.addr %s195, 8
  %s290 = scalar_lea.vmem %s2, %s289
  %s291 = scalar_lea.vmem [#allocation3], 192
  %s292 = scalar_lea.sflag [#allocation4], 3
  %p294 = scmp.lt.u32.totalorder 192, 8
  %p295 = pneg %p294
  // Predicated region
  $region108: #{_add_noise_tc.1} parent=0 // pred_check
    _
  $region109: #{_add_noise_tc.1} parent=0 // pred_check_branch
    %297 = sbr.rel (%p294) target = $region111
  $region110: #{_add_noise_tc.1} parent=0 // pred_region
    %s313 = sand.u32 192, 7
    %p314 = scmp.eq.s32.totalorder %s313, 0
    // Predicated region
    $region123: #{_add_noise_tc.1} parent=110 // pred_check
      %p315 = pneg %p314
    $region124: #{_add_noise_tc.1} parent=110 // pred_check_branch
      %317 = sbr.rel (%p315) target = $region126
    $region125: #{_add_noise_tc.1} parent=110 // pred_region
      loop: start=0, step=1, limit=1
      $region127: #{_add_noise_tc.1} parent=125 // loop_pre_header
        _
      $region128: #{_add_noise_tc.1} parent=125 // loop_header
        %s319 = sphi 0, %s323
        %p320 = scmp.ge.s32.totalorder %s319, 1
        %s324 = sphi %s290, %s290
        %s325 = sphi %s291, %s291
      $region129: #{_add_noise_tc.1} parent=125 // loop_header_branch
        %322 = sbr.rel (%p320) target = $region133
      $region130: #{_add_noise_tc.1} parent=125 // loop_body
        %v326 = vld [vmem:[%s324] sm:$0xff]
        %327 = vst [vmem:[%s325] sm:$0xff] %v326
        %v328 = vld [vmem:[%s324 + $0x8] sm:$0xff]
        %329 = vst [vmem:[%s325 + $0x8] sm:$0xff] %v328
        %v330 = vld [vmem:[%s324 + $0x10] sm:$0xff]
        %331 = vst [vmem:[%s325 + $0x10] sm:$0xff] %v330
        %v332 = vld [vmem:[%s324 + $0x18] sm:$0xff]
        %333 = vst [vmem:[%s325 + $0x18] sm:$0xff] %v332
        %v334 = vld [vmem:[%s324 + $0x20] sm:$0xff]
        %335 = vst [vmem:[%s325 + $0x20] sm:$0xff] %v334
        %v336 = vld [vmem:[%s324 + $0x28] sm:$0xff]
        %337 = vst [vmem:[%s325 + $0x28] sm:$0xff] %v336
        %v338 = vld [vmem:[%s324 + $0x30] sm:$0xff]
        %339 = vst [vmem:[%s325 + $0x30] sm:$0xff] %v338
        %v340 = vld [vmem:[%s324 + $0x38] sm:$0xff]
        %341 = vst [vmem:[%s325 + $0x38] sm:$0xff] %v340
        %v342 = vld [vmem:[%s324 + $0x40] sm:$0xff]
        %343 = vst [vmem:[%s325 + $0x40] sm:$0xff] %v342
        %v344 = vld [vmem:[%s324 + $0x48] sm:$0xff]
        %345 = vst [vmem:[%s325 + $0x48] sm:$0xff] %v344
        %v346 = vld [vmem:[%s324 + $0x50] sm:$0xff]
        %347 = vst [vmem:[%s325 + $0x50] sm:$0xff] %v346
        %v348 = vld [vmem:[%s324 + $0x58] sm:$0xff]
        %349 = vst [vmem:[%s325 + $0x58] sm:$0xff] %v348
        %v350 = vld [vmem:[%s324 + $0x60] sm:$0xff]
        %351 = vst [vmem:[%s325 + $0x60] sm:$0xff] %v350
        %v352 = vld [vmem:[%s324 + $0x68] sm:$0xff]
        %353 = vst [vmem:[%s325 + $0x68] sm:$0xff] %v352
        %v354 = vld [vmem:[%s324 + $0x70] sm:$0xff]
        %355 = vst [vmem:[%s325 + $0x70] sm:$0xff] %v354
        %v356 = vld [vmem:[%s324 + $0x78] sm:$0xff]
        %357 = vst [vmem:[%s325 + $0x78] sm:$0xff] %v356
        %v358 = vld [vmem:[%s324 + $0x80] sm:$0xff]
        %359 = vst [vmem:[%s325 + $0x80] sm:$0xff] %v358
        %v360 = vld [vmem:[%s324 + $0x88] sm:$0xff]
        %361 = vst [vmem:[%s325 + $0x88] sm:$0xff] %v360
        %v362 = vld [vmem:[%s324 + $0x90] sm:$0xff]
        %363 = vst [vmem:[%s325 + $0x90] sm:$0xff] %v362
        %v364 = vld [vmem:[%s324 + $0x98] sm:$0xff]
        %365 = vst [vmem:[%s325 + $0x98] sm:$0xff] %v364
        %v366 = vld [vmem:[%s324 + $0xa0] sm:$0xff]
        %367 = vst [vmem:[%s325 + $0xa0] sm:$0xff] %v366
        %v368 = vld [vmem:[%s324 + $0xa8] sm:$0xff]
        %369 = vst [vmem:[%s325 + $0xa8] sm:$0xff] %v368
        %v370 = vld [vmem:[%s324 + $0xb0] sm:$0xff]
        %371 = vst [vmem:[%s325 + $0xb0] sm:$0xff] %v370
        %v372 = vld [vmem:[%s324 + $0xb8] sm:$0xff]
        %373 = vst [vmem:[%s325 + $0xb8] sm:$0xff] %v372
      $region131: #{_add_noise_tc.1} parent=125 // loop_footer
        %s323 = sadd.s32 1, %s319
      $region132: #{_add_noise_tc.1} parent=125 // loop_footer_branch
        %318 = sbr.rel target = $region128
      $region133: #{_add_noise_tc.1} parent=125 // loop_exit
        _
    $region126: #{_add_noise_tc.1} parent=110 // pred_fallthru
      _
    %p374 = pneg %p314
    // Predicated region
    $region134: #{_add_noise_tc.1} parent=110 // pred_check
      _
    $region135: #{_add_noise_tc.1} parent=110 // pred_check_branch
      %376 = sbr.rel (%p314) target = $region137
    $region136: #{_add_noise_tc.1} parent=110 // pred_region
      %s377 = sand.u32 192, 7
    $region137: #{_add_noise_tc.1} parent=110 // pred_fallthru
      _
  $region111: #{_add_noise_tc.1} parent=0 // pred_fallthru
    _
  // Predicated region
  $region112: #{_add_noise_tc.1} parent=0 // pred_check
    %p298 = pneg %p294
  $region113: #{_add_noise_tc.1} parent=0 // pred_check_branch
    %300 = sbr.rel (%p298) target = $region115
  $region114: #{_add_noise_tc.1} parent=0 // pred_region
    %s301 = sshll.u32 1, 192
    %s302 = ssub.s32 %s301, 1
    loop: start=0, step=1, limit=1
    $region116: #{_add_noise_tc.1} parent=114 // loop_pre_header
      _
    $region117: #{_add_noise_tc.1} parent=114 // loop_header
      %s304 = sphi 0, %s308
      %p305 = scmp.ge.s32.totalorder %s304, 1
      %s309 = sphi %s290, %s290
      %s310 = sphi %s291, %s291
    $region118: #{_add_noise_tc.1} parent=114 // loop_header_branch
      %307 = sbr.rel (%p305) target = $region122
    $region119: #{_add_noise_tc.1} parent=114 // loop_body
      %v311 = vld [vmem:[%s309] sm:%s302]
      %312 = vst [vmem:[%s310] sm:%s302] %v311
    $region120: #{_add_noise_tc.1} parent=114 // loop_footer
      %s308 = sadd.s32 1, %s304
    $region121: #{_add_noise_tc.1} parent=114 // loop_footer_branch
      %303 = sbr.rel target = $region117
    $region122: #{_add_noise_tc.1} parent=114 // loop_exit
      _
  $region115: #{_add_noise_tc.1} parent=0 // pred_fallthru
    _
  // Predicated region
  $region138: #{_add_noise_tc.1} parent=0 // pred_check
    _
  $region139: #{_add_noise_tc.1} parent=0 // pred_check_branch
    %380 = sbr.rel (0) target = $region141
  $region140: #{_add_noise_tc.1} parent=0 // pred_region
    %381 = vsyncadd %s292, 3072
  $region141: #{_add_noise_tc.1} parent=0 // pred_fallthru
    _
  %s382 = smul.u32 8, 6
  %s383 = smul.u32 %s382, 4
  %s384 = sshll.u32 %s383, 4
  %385 = dma.done [#allocation4], %s384
  %s386 = sshll.u32 %s383, 4
  %387 = dma.done %s105, %s386
  %v388 = vld [vmem:[#allocation2] sm:$0xff]
  %v389 = vld [vmem:[#allocation2 + $0x8] sm:$0xff]
  %v390 = vld [vmem:[#allocation2 + $0x10] sm:$0xff]
  %v391 = vld [vmem:[#allocation2 + $0x18] sm:$0xff]
  %v392 = vld [vmem:[#allocation2 + $0x20] sm:$0xff]
  %v393 = vld [vmem:[#allocation2 + $0x28] sm:$0xff]
  %v394 = vld [vmem:[#allocation2 + $0x30] sm:$0xff]
  %v395 = vld [vmem:[#allocation2 + $0x38] sm:$0xff]
  %v396 = vld [vmem:[#allocation2 + $0x40] sm:$0xff]
  %v397 = vld [vmem:[#allocation2 + $0x48] sm:$0xff]
  %v398 = vld [vmem:[#allocation2 + $0x50] sm:$0xff]
  %v399 = vld [vmem:[#allocation2 + $0x58] sm:$0xff]
  %v400 = vld [vmem:[#allocation2 + $0x60] sm:$0xff]
  %v401 = vld [vmem:[#allocation2 + $0x68] sm:$0xff]
  %v402 = vld [vmem:[#allocation2 + $0x70] sm:$0xff]
  %v403 = vld [vmem:[#allocation2 + $0x78] sm:$0xff]
  %v404 = vld [vmem:[#allocation2 + $0x80] sm:$0xff]
  %v405 = vld [vmem:[#allocation2 + $0x88] sm:$0xff]
  %v406 = vld [vmem:[#allocation2 + $0x90] sm:$0xff]
  %v407 = vld [vmem:[#allocation2 + $0x98] sm:$0xff]
  %v408 = vld [vmem:[#allocation2 + $0xa0] sm:$0xff]
  %v409 = vld [vmem:[#allocation2 + $0xa8] sm:$0xff]
  %v410 = vld [vmem:[#allocation2 + $0xb0] sm:$0xff]
  %v411 = vld [vmem:[#allocation2 + $0xb8] sm:$0xff]
  %v412 = vld [vmem:[#allocation3] sm:$0xff]
  %v413 = vld [vmem:[#allocation3 + $0x8] sm:$0xff]
  %v414 = vld [vmem:[#allocation3 + $0x10] sm:$0xff]
  %v415 = vld [vmem:[#allocation3 + $0x18] sm:$0xff]
  %v416 = vld [vmem:[#allocation3 + $0x20] sm:$0xff]
  %v417 = vld [vmem:[#allocation3 + $0x28] sm:$0xff]
  %v418 = vld [vmem:[#allocation3 + $0x30] sm:$0xff]
  %v419 = vld [vmem:[#allocation3 + $0x38] sm:$0xff]
  %v420 = vld [vmem:[#allocation3 + $0x40] sm:$0xff]
  %v421 = vld [vmem:[#allocation3 + $0x48] sm:$0xff]
  %v422 = vld [vmem:[#allocation3 + $0x50] sm:$0xff]
  %v423 = vld [vmem:[#allocation3 + $0x58] sm:$0xff]
  %v424 = vld [vmem:[#allocation3 + $0x60] sm:$0xff]
  %v425 = vld [vmem:[#allocation3 + $0x68] sm:$0xff]
  %v426 = vld [vmem:[#allocation3 + $0x70] sm:$0xff]
  %v427 = vld [vmem:[#allocation3 + $0x78] sm:$0xff]
  %v428 = vld [vmem:[#allocation3 + $0x80] sm:$0xff]
  %v429 = vld [vmem:[#allocation3 + $0x88] sm:$0xff]
  %v430 = vld [vmem:[#allocation3 + $0x90] sm:$0xff]
  %v431 = vld [vmem:[#allocation3 + $0x98] sm:$0xff]
  %v432 = vld [vmem:[#allocation3 + $0xa0] sm:$0xff]
  %v433 = vld [vmem:[#allocation3 + $0xa8] sm:$0xff]
  %v434 = vld [vmem:[#allocation3 + $0xb0] sm:$0xff]
  %v435 = vld [vmem:[#allocation3 + $0xb8] sm:$0xff]
  %v436 = vmul.f32 %v388, %v388
  %v437 = vmul.f32 %v389, %v389
  %v438 = vmul.f32 %v390, %v390
  %v439 = vmul.f32 %v391, %v391
  %v440 = vmul.f32 %v392, %v392
  %v441 = vmul.f32 %v393, %v393
  %v442 = vmul.f32 %v394, %v394
  %v443 = vmul.f32 %v395, %v395
  %v444 = vmul.f32 %v396, %v396
  %v445 = vmul.f32 %v397, %v397
  %v446 = vmul.f32 %v398, %v398
  %v447 = vmul.f32 %v399, %v399
  %v448 = vmul.f32 %v400, %v400
  %v449 = vmul.f32 %v401, %v401
  %v450 = vmul.f32 %v402, %v402
  %v451 = vmul.f32 %v403, %v403
  %v452 = vmul.f32 %v404, %v404
  %v453 = vmul.f32 %v405, %v405
  %v454 = vmul.f32 %v406, %v406
  %v455 = vmul.f32 %v407, %v407
  %v456 = vmul.f32 %v408, %v408
  %v457 = vmul.f32 %v409, %v409
  %v458 = vmul.f32 %v410, %v410
  %v459 = vmul.f32 %v411, %v411
  %v460 = vadd.f32 %v436, %v437
  %v461 = vadd.f32 %v460, %v438
  %v462 = vadd.f32 %v461, %v439
  %463 = vadd.xlane.f32.xlu0 %v462
  %v464 = vpop.xlane.xlu0 %463
  %v465 = vadd.f32 %v440, %v441
  %v466 = vadd.f32 %v465, %v442
  %v467 = vadd.f32 %v466, %v443
  %468 = vadd.xlane.f32.xlu0 %v467
  %v469 = vpop.xlane.xlu0 %468
  %v470 = vadd.f32 %v444, %v445
  %v471 = vadd.f32 %v470, %v446
  %v472 = vadd.f32 %v471, %v447
  %473 = vadd.xlane.f32.xlu0 %v472
  %v474 = vpop.xlane.xlu0 %473
  %v475 = vadd.f32 %v448, %v449
  %v476 = vadd.f32 %v475, %v450
  %v477 = vadd.f32 %v476, %v451
  %478 = vadd.xlane.f32.xlu0 %v477
  %v479 = vpop.xlane.xlu0 %478
  %v480 = vadd.f32 %v452, %v453
  %v481 = vadd.f32 %v480, %v454
  %v482 = vadd.f32 %v481, %v455
  %483 = vadd.xlane.f32.xlu0 %v482
  %v484 = vpop.xlane.xlu0 %483
  %v485 = vadd.f32 %v456, %v457
  %v486 = vadd.f32 %v485, %v458
  %v487 = vadd.f32 %v486, %v459
  %488 = vadd.xlane.f32.xlu0 %v487
  %v489 = vpop.xlane.xlu0 %488
  %v490 = vadd.f32 %v464, %v469
  %v491 = vadd.f32 %v490, %v474
  %v492 = vadd.f32 %v491, %v479
  %v493 = vadd.f32 %v492, %v484
  %v494 = vadd.f32 %v493, %v489
  %v495 = vrot.slane %v494, 4
  %v496 = vadd.f32 %v494, %v495
  %v497 = vrot.slane %v496, 2
  %v498 = vadd.f32 %v496, %v497
  %v499 = vrot.slane %v498, 1
  %v500 = vadd.f32 %v498, %v499
  %v501 = vadd.f32 %v500, 0.0
  %v502 = vmul.f32 %v412, %v412
  %v503 = vmul.f32 %v413, %v413
  %v504 = vmul.f32 %v414, %v414
  %v505 = vmul.f32 %v415, %v415
  %v506 = vmul.f32 %v416, %v416
  %v507 = vmul.f32 %v417, %v417
  %v508 = vmul.f32 %v418, %v418
  %v509 = vmul.f32 %v419, %v419
  %v510 = vmul.f32 %v420, %v420
  %v511 = vmul.f32 %v421, %v421
  %v512 = vmul.f32 %v422, %v422
  %v513 = vmul.f32 %v423, %v423
  %v514 = vmul.f32 %v424, %v424
  %v515 = vmul.f32 %v425, %v425
  %v516 = vmul.f32 %v426, %v426
  %v517 = vmul.f32 %v427, %v427
  %v518 = vmul.f32 %v428, %v428
  %v519 = vmul.f32 %v429, %v429
  %v520 = vmul.f32 %v430, %v430
  %v521 = vmul.f32 %v431, %v431
  %v522 = vmul.f32 %v432, %v432
  %v523 = vmul.f32 %v433, %v433
  %v524 = vmul.f32 %v434, %v434
  %v525 = vmul.f32 %v435, %v435
  %v526 = vadd.f32 %v502, %v503
  %v527 = vadd.f32 %v526, %v504
  %v528 = vadd.f32 %v527, %v505
  %529 = vadd.xlane.f32.xlu0 %v528
  %v530 = vpop.xlane.xlu0 %529
  %v531 = vadd.f32 %v506, %v507
  %v532 = vadd.f32 %v531, %v508
  %v533 = vadd.f32 %v532, %v509
  %534 = vadd.xlane.f32.xlu0 %v533
  %v535 = vpop.xlane.xlu0 %534
  %v536 = vadd.f32 %v510, %v511
  %v537 = vadd.f32 %v536, %v512
  %v538 = vadd.f32 %v537, %v513
  %539 = vadd.xlane.f32.xlu0 %v538
  %v540 = vpop.xlane.xlu0 %539
  %v541 = vadd.f32 %v514, %v515
  %v542 = vadd.f32 %v541, %v516
  %v543 = vadd.f32 %v542, %v517
  %544 = vadd.xlane.f32.xlu0 %v543
  %v545 = vpop.xlane.xlu0 %544
  %v546 = vadd.f32 %v518, %v519
  %v547 = vadd.f32 %v546, %v520
  %v548 = vadd.f32 %v547, %v521
  %549 = vadd.xlane.f32.xlu0 %v548
  %v550 = vpop.xlane.xlu0 %549
  %v551 = vadd.f32 %v522, %v523
  %v552 = vadd.f32 %v551, %v524
  %v553 = vadd.f32 %v552, %v525
  %554 = vadd.xlane.f32.xlu0 %v553
  %v555 = vpop.xlane.xlu0 %554
  %v556 = vadd.f32 %v530, %v535
  %v557 = vadd.f32 %v556, %v540
  %v558 = vadd.f32 %v557, %v545
  %v559 = vadd.f32 %v558, %v550
  %v560 = vadd.f32 %v559, %v555
  %v561 = vrot.slane %v560, 4
  %v562 = vadd.f32 %v560, %v561
  %v563 = vrot.slane %v562, 2
  %v564 = vadd.f32 %v562, %v563
  %v565 = vrot.slane %v564, 1
  %v566 = vadd.f32 %v564, %v565
  %v567 = vadd.f32 %v566, 0.0
  %s568 = sshll.u32 %s383, 4
  %569 = dma.done %s199, %s568
  %s570 = sshll.u32 %s383, 4
  %571 = dma.done %s292, %s570
  %v572 = vld [vmem:[#allocation2 + $0xc0] sm:$0xff]
  %v573 = vld [vmem:[#allocation2 + $0xc8] sm:$0xff]
  %v574 = vld [vmem:[#allocation2 + $0xd0] sm:$0xff]
  %v575 = vld [vmem:[#allocation2 + $0xd8] sm:$0xff]
  %v576 = vld [vmem:[#allocation2 + $0xe0] sm:$0xff]
  %v577 = vld [vmem:[#allocation2 + $0xe8] sm:$0xff]
  %v578 = vld [vmem:[#allocation2 + $0xf0] sm:$0xff]
  %v579 = vld [vmem:[#allocation2 + $0xf8] sm:$0xff]
  %v580 = vld [vmem:[#allocation2 + $0x100] sm:$0xff]
  %v581 = vld [vmem:[#allocation2 + $0x108] sm:$0xff]
  %v582 = vld [vmem:[#allocation2 + $0x110] sm:$0xff]
  %v583 = vld [vmem:[#allocation2 + $0x118] sm:$0xff]
  %v584 = vld [vmem:[#allocation2 + $0x120] sm:$0xff]
  %v585 = vld [vmem:[#allocation2 + $0x128] sm:$0xff]
  %v586 = vld [vmem:[#allocation2 + $0x130] sm:$0xff]
  %v587 = vld [vmem:[#allocation2 + $0x138] sm:$0xff]
  %v588 = vld [vmem:[#allocation2 + $0x140] sm:$0xff]
  %v589 = vld [vmem:[#allocation2 + $0x148] sm:$0xff]
  %v590 = vld [vmem:[#allocation2 + $0x150] sm:$0xff]
  %v591 = vld [vmem:[#allocation2 + $0x158] sm:$0xff]
  %v592 = vld [vmem:[#allocation2 + $0x160] sm:$0xff]
  %v593 = vld [vmem:[#allocation2 + $0x168] sm:$0xff]
  %v594 = vld [vmem:[#allocation2 + $0x170] sm:$0xff]
  %v595 = vld [vmem:[#allocation2 + $0x178] sm:$0xff]
  %v596 = vld [vmem:[#allocation3 + $0xc0] sm:$0xff]
  %v597 = vld [vmem:[#allocation3 + $0xc8] sm:$0xff]
  %v598 = vld [vmem:[#allocation3 + $0xd0] sm:$0xff]
  %v599 = vld [vmem:[#allocation3 + $0xd8] sm:$0xff]
  %v600 = vld [vmem:[#allocation3 + $0xe0] sm:$0xff]
  %v601 = vld [vmem:[#allocation3 + $0xe8] sm:$0xff]
  %v602 = vld [vmem:[#allocation3 + $0xf0] sm:$0xff]
  %v603 = vld [vmem:[#allocation3 + $0xf8] sm:$0xff]
  %v604 = vld [vmem:[#allocation3 + $0x100] sm:$0xff]
  %v605 = vld [vmem:[#allocation3 + $0x108] sm:$0xff]
  %v606 = vld [vmem:[#allocation3 + $0x110] sm:$0xff]
  %v607 = vld [vmem:[#allocation3 + $0x118] sm:$0xff]
  %v608 = vld [vmem:[#allocation3 + $0x120] sm:$0xff]
  %v609 = vld [vmem:[#allocation3 + $0x128] sm:$0xff]
  %v610 = vld [vmem:[#allocation3 + $0x130] sm:$0xff]
  %v611 = vld [vmem:[#allocation3 + $0x138] sm:$0xff]
  %v612 = vld [vmem:[#allocation3 + $0x140] sm:$0xff]
  %v613 = vld [vmem:[#allocation3 + $0x148] sm:$0xff]
  %v614 = vld [vmem:[#allocation3 + $0x150] sm:$0xff]
  %v615 = vld [vmem:[#allocation3 + $0x158] sm:$0xff]
  %v616 = vld [vmem:[#allocation3 + $0x160] sm:$0xff]
  %v617 = vld [vmem:[#allocation3 + $0x168] sm:$0xff]
  %v618 = vld [vmem:[#allocation3 + $0x170] sm:$0xff]
  %v619 = vld [vmem:[#allocation3 + $0x178] sm:$0xff]
  %v620 = vmul.f32 %v572, %v572
  %v621 = vmul.f32 %v573, %v573
  %v622 = vmul.f32 %v574, %v574
  %v623 = vmul.f32 %v575, %v575
  %v624 = vmul.f32 %v576, %v576
  %v625 = vmul.f32 %v577, %v577
  %v626 = vmul.f32 %v578, %v578
  %v627 = vmul.f32 %v579, %v579
  %v628 = vmul.f32 %v580, %v580
  %v629 = vmul.f32 %v581, %v581
  %v630 = vmul.f32 %v582, %v582
  %v631 = vmul.f32 %v583, %v583
  %v632 = vmul.f32 %v584, %v584
  %v633 = vmul.f32 %v585, %v585
  %v634 = vmul.f32 %v586, %v586
  %v635 = vmul.f32 %v587, %v587
  %v636 = vmul.f32 %v588, %v588
  %v637 = vmul.f32 %v589, %v589
  %v638 = vmul.f32 %v590, %v590
  %v639 = vmul.f32 %v591, %v591
  %v640 = vmul.f32 %v592, %v592
  %v641 = vmul.f32 %v593, %v593
  %v642 = vmul.f32 %v594, %v594
  %v643 = vmul.f32 %v595, %v595
  %v644 = vadd.f32 %v620, %v621
  %v645 = vadd.f32 %v644, %v622
  %v646 = vadd.f32 %v645, %v623
  %647 = vadd.xlane.f32.xlu0 %v646
  %v648 = vpop.xlane.xlu0 %647
  %v649 = vadd.f32 %v624, %v625
  %v650 = vadd.f32 %v649, %v626
  %v651 = vadd.f32 %v650, %v627
  %652 = vadd.xlane.f32.xlu0 %v651
  %v653 = vpop.xlane.xlu0 %652
  %v654 = vadd.f32 %v628, %v629
  %v655 = vadd.f32 %v654, %v630
  %v656 = vadd.f32 %v655, %v631
  %657 = vadd.xlane.f32.xlu0 %v656
  %v658 = vpop.xlane.xlu0 %657
  %v659 = vadd.f32 %v632, %v633
  %v660 = vadd.f32 %v659, %v634
  %v661 = vadd.f32 %v660, %v635
  %662 = vadd.xlane.f32.xlu0 %v661
  %v663 = vpop.xlane.xlu0 %662
  %v664 = vadd.f32 %v636, %v637
  %v665 = vadd.f32 %v664, %v638
  %v666 = vadd.f32 %v665, %v639
  %667 = vadd.xlane.f32.xlu0 %v666
  %v668 = vpop.xlane.xlu0 %667
  %v669 = vadd.f32 %v640, %v641
  %v670 = vadd.f32 %v669, %v642
  %v671 = vadd.f32 %v670, %v643
  %672 = vadd.xlane.f32.xlu0 %v671
  %v673 = vpop.xlane.xlu0 %672
  %v674 = vadd.f32 %v648, %v653
  %v675 = vadd.f32 %v674, %v658
  %v676 = vadd.f32 %v675, %v663
  %v677 = vadd.f32 %v676, %v668
  %v678 = vadd.f32 %v677, %v673
  %v679 = vrot.slane %v678, 4
  %v680 = vadd.f32 %v678, %v679
  %v681 = vrot.slane %v680, 2
  %v682 = vadd.f32 %v680, %v681
  %v683 = vrot.slane %v682, 1
  %v684 = vadd.f32 %v682, %v683
  %v685 = vadd.f32 %v501, %v684
  %v686 = vmul.f32 %v596, %v596
  %v687 = vmul.f32 %v597, %v597
  %v688 = vmul.f32 %v598, %v598
  %v689 = vmul.f32 %v599, %v599
  %v690 = vmul.f32 %v600, %v600
  %v691 = vmul.f32 %v601, %v601
  %v692 = vmul.f32 %v602, %v602
  %v693 = vmul.f32 %v603, %v603
  %v694 = vmul.f32 %v604, %v604
  %v695 = vmul.f32 %v605, %v605
  %v696 = vmul.f32 %v606, %v606
  %v697 = vmul.f32 %v607, %v607
  %v698 = vmul.f32 %v608, %v608
  %v699 = vmul.f32 %v609, %v609
  %v700 = vmul.f32 %v610, %v610
  %v701 = vmul.f32 %v611, %v611
  %v702 = vmul.f32 %v612, %v612
  %v703 = vmul.f32 %v613, %v613
  %v704 = vmul.f32 %v614, %v614
  %v705 = vmul.f32 %v615, %v615
  %v706 = vmul.f32 %v616, %v616
  %v707 = vmul.f32 %v617, %v617
  %v708 = vmul.f32 %v618, %v618
  %v709 = vmul.f32 %v619, %v619
  %v710 = vadd.f32 %v686, %v687
  %v711 = vadd.f32 %v710, %v688
  %v712 = vadd.f32 %v711, %v689
  %713 = vadd.xlane.f32.xlu0 %v712
  %v714 = vpop.xlane.xlu0 %713
  %v715 = vadd.f32 %v690, %v691
  %v716 = vadd.f32 %v715, %v692
  %v717 = vadd.f32 %v716, %v693
  %718 = vadd.xlane.f32.xlu0 %v717
  %v719 = vpop.xlane.xlu0 %718
  %v720 = vadd.f32 %v694, %v695
  %v721 = vadd.f32 %v720, %v696
  %v722 = vadd.f32 %v721, %v697
  %723 = vadd.xlane.f32.xlu0 %v722
  %v724 = vpop.xlane.xlu0 %723
  %v725 = vadd.f32 %v698, %v699
  %v726 = vadd.f32 %v725, %v700
  %v727 = vadd.f32 %v726, %v701
  %728 = vadd.xlane.f32.xlu0 %v727
  %v729 = vpop.xlane.xlu0 %728
  %v730 = vadd.f32 %v702, %v703
  %v731 = vadd.f32 %v730, %v704
  %v732 = vadd.f32 %v731, %v705
  %733 = vadd.xlane.f32.xlu0 %v732
  %v734 = vpop.xlane.xlu0 %733
  %v735 = vadd.f32 %v706, %v707
  %v736 = vadd.f32 %v735, %v708
  %v737 = vadd.f32 %v736, %v709
  %738 = vadd.xlane.f32.xlu0 %v737
  %v739 = vpop.xlane.xlu0 %738
  %v740 = vadd.f32 %v714, %v719
  %v741 = vadd.f32 %v740, %v724
  %v742 = vadd.f32 %v741, %v729
  %v743 = vadd.f32 %v742, %v734
  %v744 = vadd.f32 %v743, %v739
  %v745 = vrot.slane %v744, 4
  %v746 = vadd.f32 %v744, %v745
  %v747 = vrot.slane %v746, 2
  %v748 = vadd.f32 %v746, %v747
  %v749 = vrot.slane %v748, 1
  %v750 = vadd.f32 %v748, %v749
  %v751 = vadd.f32 %v567, %v750
  %v752 = vrcp.pop %v751
  %v753 = vmul.f32 %v685, %v752
  %v754 = vrsqrt.pop %v753
  %v755 = vmul.f32 %v753, %v754
  %vm756 = vcmp.eq.f32.partialorder %v753, inf
  %v757 = vsel %vm756, %v753, %v755
  %vm758 = vcmp.eq.f32.partialorder %v753, 0.0
  %v759 = vand.u32 %v753, 2147483648
  %v760 = vsel %vm758, %v759, %v757
  %s761 = sld [smem:[#allocation6]]
  %v762 = vstv %s761
  %v763 = vmul.f32 %v760, %v762
  %v764 = vld [vmem:[#allocation2] sm:$0xff]
  %v765 = vld [vmem:[#allocation2 + $0x8] sm:$0xff]
  %v766 = vld [vmem:[#allocation2 + $0x10] sm:$0xff]
  %v767 = vld [vmem:[#allocation2 + $0x18] sm:$0xff]
  %v768 = vld [vmem:[#allocation2 + $0x20] sm:$0xff]
  %v769 = vld [vmem:[#allocation2 + $0x28] sm:$0xff]
  %v770 = vld [vmem:[#allocation2 + $0x30] sm:$0xff]
  %v771 = vld [vmem:[#allocation2 + $0x38] sm:$0xff]
  %v772 = vld [vmem:[#allocation2 + $0x40] sm:$0xff]
  %v773 = vld [vmem:[#allocation2 + $0x48] sm:$0xff]
  %v774 = vld [vmem:[#allocation2 + $0x50] sm:$0xff]
  %v775 = vld [vmem:[#allocation2 + $0x58] sm:$0xff]
  %v776 = vld [vmem:[#allocation2 + $0x60] sm:$0xff]
  %v777 = vld [vmem:[#allocation2 + $0x68] sm:$0xff]
  %v778 = vld [vmem:[#allocation2 + $0x70] sm:$0xff]
  %v779 = vld [vmem:[#allocation2 + $0x78] sm:$0xff]
  %v780 = vld [vmem:[#allocation2 + $0x80] sm:$0xff]
  %v781 = vld [vmem:[#allocation2 + $0x88] sm:$0xff]
  %v782 = vld [vmem:[#allocation2 + $0x90] sm:$0xff]
  %v783 = vld [vmem:[#allocation2 + $0x98] sm:$0xff]
  %v784 = vld [vmem:[#allocation2 + $0xa0] sm:$0xff]
  %v785 = vld [vmem:[#allocation2 + $0xa8] sm:$0xff]
  %v786 = vld [vmem:[#allocation2 + $0xb0] sm:$0xff]
  %v787 = vld [vmem:[#allocation2 + $0xb8] sm:$0xff]
  %v788 = vld [vmem:[#allocation3] sm:$0xff]
  %v789 = vld [vmem:[#allocation3 + $0x8] sm:$0xff]
  %v790 = vld [vmem:[#allocation3 + $0x10] sm:$0xff]
  %v791 = vld [vmem:[#allocation3 + $0x18] sm:$0xff]
  %v792 = vld [vmem:[#allocation3 + $0x20] sm:$0xff]
  %v793 = vld [vmem:[#allocation3 + $0x28] sm:$0xff]
  %v794 = vld [vmem:[#allocation3 + $0x30] sm:$0xff]
  %v795 = vld [vmem:[#allocation3 + $0x38] sm:$0xff]
  %v796 = vld [vmem:[#allocation3 + $0x40] sm:$0xff]
  %v797 = vld [vmem:[#allocation3 + $0x48] sm:$0xff]
  %v798 = vld [vmem:[#allocation3 + $0x50] sm:$0xff]
  %v799 = vld [vmem:[#allocation3 + $0x58] sm:$0xff]
  %v800 = vld [vmem:[#allocation3 + $0x60] sm:$0xff]
  %v801 = vld [vmem:[#allocation3 + $0x68] sm:$0xff]
  %v802 = vld [vmem:[#allocation3 + $0x70] sm:$0xff]
  %v803 = vld [vmem:[#allocation3 + $0x78] sm:$0xff]
  %v804 = vld [vmem:[#allocation3 + $0x80] sm:$0xff]
  %v805 = vld [vmem:[#allocation3 + $0x88] sm:$0xff]
  %v806 = vld [vmem:[#allocation3 + $0x90] sm:$0xff]
  %v807 = vld [vmem:[#allocation3 + $0x98] sm:$0xff]
  %v808 = vld [vmem:[#allocation3 + $0xa0] sm:$0xff]
  %v809 = vld [vmem:[#allocation3 + $0xa8] sm:$0xff]
  %v810 = vld [vmem:[#allocation3 + $0xb0] sm:$0xff]
  %v811 = vld [vmem:[#allocation3 + $0xb8] sm:$0xff]
  %v812 = vmul.f32 %v763, %v788
  %v813 = vmul.f32 %v763, %v789
  %v814 = vmul.f32 %v763, %v790
  %v815 = vmul.f32 %v763, %v791
  %v816 = vmul.f32 %v763, %v792
  %v817 = vmul.f32 %v763, %v793
  %v818 = vmul.f32 %v763, %v794
  %v819 = vmul.f32 %v763, %v795
  %v820 = vmul.f32 %v763, %v796
  %v821 = vmul.f32 %v763, %v797
  %v822 = vmul.f32 %v763, %v798
  %v823 = vmul.f32 %v763, %v799
  %v824 = vmul.f32 %v763, %v800
  %v825 = vmul.f32 %v763, %v801
  %v826 = vmul.f32 %v763, %v802
  %v827 = vmul.f32 %v763, %v803
  %v828 = vmul.f32 %v763, %v804
  %v829 = vmul.f32 %v763, %v805
  %v830 = vmul.f32 %v763, %v806
  %v831 = vmul.f32 %v763, %v807
  %v832 = vmul.f32 %v763, %v808
  %v833 = vmul.f32 %v763, %v809
  %v834 = vmul.f32 %v763, %v810
  %v835 = vmul.f32 %v763, %v811
  %v836 = vadd.f32 %v764, %v812
  %v837 = vadd.f32 %v765, %v813
  %v838 = vadd.f32 %v766, %v814
  %v839 = vadd.f32 %v767, %v815
  %v840 = vadd.f32 %v768, %v816
  %v841 = vadd.f32 %v769, %v817
  %v842 = vadd.f32 %v770, %v818
  %v843 = vadd.f32 %v771, %v819
  %v844 = vadd.f32 %v772, %v820
  %v845 = vadd.f32 %v773, %v821
  %v846 = vadd.f32 %v774, %v822
  %v847 = vadd.f32 %v775, %v823
  %v848 = vadd.f32 %v776, %v824
  %v849 = vadd.f32 %v777, %v825
  %v850 = vadd.f32 %v778, %v826
  %v851 = vadd.f32 %v779, %v827
  %v852 = vadd.f32 %v780, %v828
  %v853 = vadd.f32 %v781, %v829
  %v854 = vadd.f32 %v782, %v830
  %v855 = vadd.f32 %v783, %v831
  %v856 = vadd.f32 %v784, %v832
  %v857 = vadd.f32 %v785, %v833
  %v858 = vadd.f32 %v786, %v834
  %v859 = vadd.f32 %v787, %v835
  %860 = vst [vmem:[#allocation2] sm:$0xff] %v836
  %861 = vst [vmem:[#allocation2 + $0x8] sm:$0xff] %v837
  %862 = vst [vmem:[#allocation2 + $0x10] sm:$0xff] %v838
  %863 = vst [vmem:[#allocation2 + $0x18] sm:$0xff] %v839
  %864 = vst [vmem:[#allocation2 + $0x20] sm:$0xff] %v840
  %865 = vst [vmem:[#allocation2 + $0x28] sm:$0xff] %v841
  %866 = vst [vmem:[#allocation2 + $0x30] sm:$0xff] %v842
  %867 = vst [vmem:[#allocation2 + $0x38] sm:$0xff] %v843
  %868 = vst [vmem:[#allocation2 + $0x40] sm:$0xff] %v844
  %869 = vst [vmem:[#allocation2 + $0x48] sm:$0xff] %v845
  %870 = vst [vmem:[#allocation2 + $0x50] sm:$0xff] %v846
  %871 = vst [vmem:[#allocation2 + $0x58] sm:$0xff] %v847
  %872 = vst [vmem:[#allocation2 + $0x60] sm:$0xff] %v848
  %873 = vst [vmem:[#allocation2 + $0x68] sm:$0xff] %v849
  %874 = vst [vmem:[#allocation2 + $0x70] sm:$0xff] %v850
  %875 = vst [vmem:[#allocation2 + $0x78] sm:$0xff] %v851
  %876 = vst [vmem:[#allocation2 + $0x80] sm:$0xff] %v852
  %877 = vst [vmem:[#allocation2 + $0x88] sm:$0xff] %v853
  %878 = vst [vmem:[#allocation2 + $0x90] sm:$0xff] %v854
  %879 = vst [vmem:[#allocation2 + $0x98] sm:$0xff] %v855
  %880 = vst [vmem:[#allocation2 + $0xa0] sm:$0xff] %v856
  %881 = vst [vmem:[#allocation2 + $0xa8] sm:$0xff] %v857
  %882 = vst [vmem:[#allocation2 + $0xb0] sm:$0xff] %v858
  %883 = vst [vmem:[#allocation2 + $0xb8] sm:$0xff] %v859
  %s884 = smul.addr %s11, 8
  %s885 = scalar_lea.vmem %s3, %s884
  %p887 = scmp.lt.u32.totalorder 192, 8
  %p888 = pneg %p887
  // Predicated region
  $region142: #{_add_noise_tc.1} parent=0 // pred_check
    _
  $region143: #{_add_noise_tc.1} parent=0 // pred_check_branch
    %890 = sbr.rel (%p887) target = $region145
  $region144: #{_add_noise_tc.1} parent=0 // pred_region
    %s906 = sand.u32 192, 7
    %p907 = scmp.eq.s32.totalorder %s906, 0
    // Predicated region
    $region157: #{_add_noise_tc.1} parent=144 // pred_check
      %p908 = pneg %p907
    $region158: #{_add_noise_tc.1} parent=144 // pred_check_branch
      %910 = sbr.rel (%p908) target = $region160
    $region159: #{_add_noise_tc.1} parent=144 // pred_region
      loop: start=0, step=1, limit=1
      $region161: #{_add_noise_tc.1} parent=159 // loop_pre_header
        _
      $region162: #{_add_noise_tc.1} parent=159 // loop_header
        %s912 = sphi 0, %s916
        %p913 = scmp.ge.s32.totalorder %s912, 1
        %s917 = sphi [#allocation2], [#allocation2]
        %s918 = sphi %s885, %s885
      $region163: #{_add_noise_tc.1} parent=159 // loop_header_branch
        %915 = sbr.rel (%p913) target = $region167
      $region164: #{_add_noise_tc.1} parent=159 // loop_body
        %v919 = vld [vmem:[%s917] sm:$0xff]
        %920 = vst [vmem:[%s918] sm:$0xff] %v919
        %v921 = vld [vmem:[%s917 + $0x8] sm:$0xff]
        %922 = vst [vmem:[%s918 + $0x8] sm:$0xff] %v921
        %v923 = vld [vmem:[%s917 + $0x10] sm:$0xff]
        %924 = vst [vmem:[%s918 + $0x10] sm:$0xff] %v923
        %v925 = vld [vmem:[%s917 + $0x18] sm:$0xff]
        %926 = vst [vmem:[%s918 + $0x18] sm:$0xff] %v925
        %v927 = vld [vmem:[%s917 + $0x20] sm:$0xff]
        %928 = vst [vmem:[%s918 + $0x20] sm:$0xff] %v927
        %v929 = vld [vmem:[%s917 + $0x28] sm:$0xff]
        %930 = vst [vmem:[%s918 + $0x28] sm:$0xff] %v929
        %v931 = vld [vmem:[%s917 + $0x30] sm:$0xff]
        %932 = vst [vmem:[%s918 + $0x30] sm:$0xff] %v931
        %v933 = vld [vmem:[%s917 + $0x38] sm:$0xff]
        %934 = vst [vmem:[%s918 + $0x38] sm:$0xff] %v933
        %v935 = vld [vmem:[%s917 + $0x40] sm:$0xff]
        %936 = vst [vmem:[%s918 + $0x40] sm:$0xff] %v935
        %v937 = vld [vmem:[%s917 + $0x48] sm:$0xff]
        %938 = vst [vmem:[%s918 + $0x48] sm:$0xff] %v937
        %v939 = vld [vmem:[%s917 + $0x50] sm:$0xff]
        %940 = vst [vmem:[%s918 + $0x50] sm:$0xff] %v939
        %v941 = vld [vmem:[%s917 + $0x58] sm:$0xff]
        %942 = vst [vmem:[%s918 + $0x58] sm:$0xff] %v941
        %v943 = vld [vmem:[%s917 + $0x60] sm:$0xff]
        %944 = vst [vmem:[%s918 + $0x60] sm:$0xff] %v943
        %v945 = vld [vmem:[%s917 + $0x68] sm:$0xff]
        %946 = vst [vmem:[%s918 + $0x68] sm:$0xff] %v945
        %v947 = vld [vmem:[%s917 + $0x70] sm:$0xff]
        %948 = vst [vmem:[%s918 + $0x70] sm:$0xff] %v947
        %v949 = vld [vmem:[%s917 + $0x78] sm:$0xff]
        %950 = vst [vmem:[%s918 + $0x78] sm:$0xff] %v949
        %v951 = vld [vmem:[%s917 + $0x80] sm:$0xff]
        %952 = vst [vmem:[%s918 + $0x80] sm:$0xff] %v951
        %v953 = vld [vmem:[%s917 + $0x88] sm:$0xff]
        %954 = vst [vmem:[%s918 + $0x88] sm:$0xff] %v953
        %v955 = vld [vmem:[%s917 + $0x90] sm:$0xff]
        %956 = vst [vmem:[%s918 + $0x90] sm:$0xff] %v955
        %v957 = vld [vmem:[%s917 + $0x98] sm:$0xff]
        %958 = vst [vmem:[%s918 + $0x98] sm:$0xff] %v957
        %v959 = vld [vmem:[%s917 + $0xa0] sm:$0xff]
        %960 = vst [vmem:[%s918 + $0xa0] sm:$0xff] %v959
        %v961 = vld [vmem:[%s917 + $0xa8] sm:$0xff]
        %962 = vst [vmem:[%s918 + $0xa8] sm:$0xff] %v961
        %v963 = vld [vmem:[%s917 + $0xb0] sm:$0xff]
        %964 = vst [vmem:[%s918 + $0xb0] sm:$0xff] %v963
        %v965 = vld [vmem:[%s917 + $0xb8] sm:$0xff]
        %966 = vst [vmem:[%s918 + $0xb8] sm:$0xff] %v965
      $region165: #{_add_noise_tc.1} parent=159 // loop_footer
        %s916 = sadd.s32 1, %s912
      $region166: #{_add_noise_tc.1} parent=159 // loop_footer_branch
        %911 = sbr.rel target = $region162
      $region167: #{_add_noise_tc.1} parent=159 // loop_exit
        _
    $region160: #{_add_noise_tc.1} parent=144 // pred_fallthru
      _
    %p967 = pneg %p907
    // Predicated region
    $region168: #{_add_noise_tc.1} parent=144 // pred_check
      _
    $region169: #{_add_noise_tc.1} parent=144 // pred_check_branch
      %969 = sbr.rel (%p907) target = $region171
    $region170: #{_add_noise_tc.1} parent=144 // pred_region
      %s970 = sand.u32 192, 7
    $region171: #{_add_noise_tc.1} parent=144 // pred_fallthru
      _
  $region145: #{_add_noise_tc.1} parent=0 // pred_fallthru
    _
  // Predicated region
  $region146: #{_add_noise_tc.1} parent=0 // pred_check
    %p891 = pneg %p887
  $region147: #{_add_noise_tc.1} parent=0 // pred_check_branch
    %893 = sbr.rel (%p891) target = $region149
  $region148: #{_add_noise_tc.1} parent=0 // pred_region
    %s894 = sshll.u32 1, 192
    %s895 = ssub.s32 %s894, 1
    loop: start=0, step=1, limit=1
    $region150: #{_add_noise_tc.1} parent=148 // loop_pre_header
      _
    $region151: #{_add_noise_tc.1} parent=148 // loop_header
      %s897 = sphi 0, %s901
      %p898 = scmp.ge.s32.totalorder %s897, 1
      %s902 = sphi [#allocation2], [#allocation2]
      %s903 = sphi %s885, %s885
    $region152: #{_add_noise_tc.1} parent=148 // loop_header_branch
      %900 = sbr.rel (%p898) target = $region156
    $region153: #{_add_noise_tc.1} parent=148 // loop_body
      %v904 = vld [vmem:[%s902] sm:%s895]
      %905 = vst [vmem:[%s903] sm:%s895] %v904
    $region154: #{_add_noise_tc.1} parent=148 // loop_footer
      %s901 = sadd.s32 1, %s897
    $region155: #{_add_noise_tc.1} parent=148 // loop_footer_branch
      %896 = sbr.rel target = $region151
    $region156: #{_add_noise_tc.1} parent=148 // loop_exit
      _
  $region149: #{_add_noise_tc.1} parent=0 // pred_fallthru
    _
  // Predicated region
  $region172: #{_add_noise_tc.1} parent=0 // pred_check
    _
  $region173: #{_add_noise_tc.1} parent=0 // pred_check_branch
    %973 = sbr.rel (0) target = $region175
  $region174: #{_add_noise_tc.1} parent=0 // pred_region
    %974 = vsyncadd [#allocation5], 3072
  $region175: #{_add_noise_tc.1} parent=0 // pred_fallthru
    _
  %v975 = vld [vmem:[#allocation2 + $0xc0] sm:$0xff]
  %v976 = vld [vmem:[#allocation2 + $0xc8] sm:$0xff]
  %v977 = vld [vmem:[#allocation2 + $0xd0] sm:$0xff]
  %v978 = vld [vmem:[#allocation2 + $0xd8] sm:$0xff]
  %v979 = vld [vmem:[#allocation2 + $0xe0] sm:$0xff]
  %v980 = vld [vmem:[#allocation2 + $0xe8] sm:$0xff]
  %v981 = vld [vmem:[#allocation2 + $0xf0] sm:$0xff]
  %v982 = vld [vmem:[#allocation2 + $0xf8] sm:$0xff]
  %v983 = vld [vmem:[#allocation2 + $0x100] sm:$0xff]
  %v984 = vld [vmem:[#allocation2 + $0x108] sm:$0xff]
  %v985 = vld [vmem:[#allocation2 + $0x110] sm:$0xff]
  %v986 = vld [vmem:[#allocation2 + $0x118] sm:$0xff]
  %v987 = vld [vmem:[#allocation2 + $0x120] sm:$0xff]
  %v988 = vld [vmem:[#allocation2 + $0x128] sm:$0xff]
  %v989 = vld [vmem:[#allocation2 + $0x130] sm:$0xff]
  %v990 = vld [vmem:[#allocation2 + $0x138] sm:$0xff]
  %v991 = vld [vmem:[#allocation2 + $0x140] sm:$0xff]
  %v992 = vld [vmem:[#allocation2 + $0x148] sm:$0xff]
  %v993 = vld [vmem:[#allocation2 + $0x150] sm:$0xff]
  %v994 = vld [vmem:[#allocation2 + $0x158] sm:$0xff]
  %v995 = vld [vmem:[#allocation2 + $0x160] sm:$0xff]
  %v996 = vld [vmem:[#allocation2 + $0x168] sm:$0xff]
  %v997 = vld [vmem:[#allocation2 + $0x170] sm:$0xff]
  %v998 = vld [vmem:[#allocation2 + $0x178] sm:$0xff]
  %v999 = vld [vmem:[#allocation3 + $0xc0] sm:$0xff]
  %v1000 = vld [vmem:[#allocation3 + $0xc8] sm:$0xff]
  %v1001 = vld [vmem:[#allocation3 + $0xd0] sm:$0xff]
  %v1002 = vld [vmem:[#allocation3 + $0xd8] sm:$0xff]
  %v1003 = vld [vmem:[#allocation3 + $0xe0] sm:$0xff]
  %v1004 = vld [vmem:[#allocation3 + $0xe8] sm:$0xff]
  %v1005 = vld [vmem:[#allocation3 + $0xf0] sm:$0xff]
  %v1006 = vld [vmem:[#allocation3 + $0xf8] sm:$0xff]
  %v1007 = vld [vmem:[#allocation3 + $0x100] sm:$0xff]
  %v1008 = vld [vmem:[#allocation3 + $0x108] sm:$0xff]
  %v1009 = vld [vmem:[#allocation3 + $0x110] sm:$0xff]
  %v1010 = vld [vmem:[#allocation3 + $0x118] sm:$0xff]
  %v1011 = vld [vmem:[#allocation3 + $0x120] sm:$0xff]
  %v1012 = vld [vmem:[#allocation3 + $0x128] sm:$0xff]
  %v1013 = vld [vmem:[#allocation3 + $0x130] sm:$0xff]
  %v1014 = vld [vmem:[#allocation3 + $0x138] sm:$0xff]
  %v1015 = vld [vmem:[#allocation3 + $0x140] sm:$0xff]
  %v1016 = vld [vmem:[#allocation3 + $0x148] sm:$0xff]
  %v1017 = vld [vmem:[#allocation3 + $0x150] sm:$0xff]
  %v1018 = vld [vmem:[#allocation3 + $0x158] sm:$0xff]
  %v1019 = vld [vmem:[#allocation3 + $0x160] sm:$0xff]
  %v1020 = vld [vmem:[#allocation3 + $0x168] sm:$0xff]
  %v1021 = vld [vmem:[#allocation3 + $0x170] sm:$0xff]
  %v1022 = vld [vmem:[#allocation3 + $0x178] sm:$0xff]
  %v1023 = vmul.f32 %v763, %v999
  %v1024 = vmul.f32 %v763, %v1000
  %v1025 = vmul.f32 %v763, %v1001
  %v1026 = vmul.f32 %v763, %v1002
  %v1027 = vmul.f32 %v763, %v1003
  %v1028 = vmul.f32 %v763, %v1004
  %v1029 = vmul.f32 %v763, %v1005
  %v1030 = vmul.f32 %v763, %v1006
  %v1031 = vmul.f32 %v763, %v1007
  %v1032 = vmul.f32 %v763, %v1008
  %v1033 = vmul.f32 %v763, %v1009
  %v1034 = vmul.f32 %v763, %v1010
  %v1035 = vmul.f32 %v763, %v1011
  %v1036 = vmul.f32 %v763, %v1012
  %v1037 = vmul.f32 %v763, %v1013
  %v1038 = vmul.f32 %v763, %v1014
  %v1039 = vmul.f32 %v763, %v1015
  %v1040 = vmul.f32 %v763, %v1016
  %v1041 = vmul.f32 %v763, %v1017
  %v1042 = vmul.f32 %v763, %v1018
  %v1043 = vmul.f32 %v763, %v1019
  %v1044 = vmul.f32 %v763, %v1020
  %v1045 = vmul.f32 %v763, %v1021
  %v1046 = vmul.f32 %v763, %v1022
  %v1047 = vadd.f32 %v975, %v1023
  %v1048 = vadd.f32 %v976, %v1024
  %v1049 = vadd.f32 %v977, %v1025
  %v1050 = vadd.f32 %v978, %v1026
  %v1051 = vadd.f32 %v979, %v1027
  %v1052 = vadd.f32 %v980, %v1028
  %v1053 = vadd.f32 %v981, %v1029
  %v1054 = vadd.f32 %v982, %v1030
  %v1055 = vadd.f32 %v983, %v1031
  %v1056 = vadd.f32 %v984, %v1032
  %v1057 = vadd.f32 %v985, %v1033
  %v1058 = vadd.f32 %v986, %v1034
  %v1059 = vadd.f32 %v987, %v1035
  %v1060 = vadd.f32 %v988, %v1036
  %v1061 = vadd.f32 %v989, %v1037
  %v1062 = vadd.f32 %v990, %v1038
  %v1063 = vadd.f32 %v991, %v1039
  %v1064 = vadd.f32 %v992, %v1040
  %v1065 = vadd.f32 %v993, %v1041
  %v1066 = vadd.f32 %v994, %v1042
  %v1067 = vadd.f32 %v995, %v1043
  %v1068 = vadd.f32 %v996, %v1044
  %v1069 = vadd.f32 %v997, %v1045
  %v1070 = vadd.f32 %v998, %v1046
  %1071 = vst [vmem:[#allocation2 + $0xc0] sm:$0xff] %v1047
  %1072 = vst [vmem:[#allocation2 + $0xc8] sm:$0xff] %v1048
  %1073 = vst [vmem:[#allocation2 + $0xd0] sm:$0xff] %v1049
  %1074 = vst [vmem:[#allocation2 + $0xd8] sm:$0xff] %v1050
  %1075 = vst [vmem:[#allocation2 + $0xe0] sm:$0xff] %v1051
  %1076 = vst [vmem:[#allocation2 + $0xe8] sm:$0xff] %v1052
  %1077 = vst [vmem:[#allocation2 + $0xf0] sm:$0xff] %v1053
  %1078 = vst [vmem:[#allocation2 + $0xf8] sm:$0xff] %v1054
  %1079 = vst [vmem:[#allocation2 + $0x100] sm:$0xff] %v1055
  %1080 = vst [vmem:[#allocation2 + $0x108] sm:$0xff] %v1056
  %1081 = vst [vmem:[#allocation2 + $0x110] sm:$0xff] %v1057
  %1082 = vst [vmem:[#allocation2 + $0x118] sm:$0xff] %v1058
  %1083 = vst [vmem:[#allocation2 + $0x120] sm:$0xff] %v1059
  %1084 = vst [vmem:[#allocation2 + $0x128] sm:$0xff] %v1060
  %1085 = vst [vmem:[#allocation2 + $0x130] sm:$0xff] %v1061
  %1086 = vst [vmem:[#allocation2 + $0x138] sm:$0xff] %v1062
  %1087 = vst [vmem:[#allocation2 + $0x140] sm:$0xff] %v1063
  %1088 = vst [vmem:[#allocation2 + $0x148] sm:$0xff] %v1064
  %1089 = vst [vmem:[#allocation2 + $0x150] sm:$0xff] %v1065
  %1090 = vst [vmem:[#allocation2 + $0x158] sm:$0xff] %v1066
  %1091 = vst [vmem:[#allocation2 + $0x160] sm:$0xff] %v1067
  %1092 = vst [vmem:[#allocation2 + $0x168] sm:$0xff] %v1068
  %1093 = vst [vmem:[#allocation2 + $0x170] sm:$0xff] %v1069
  %1094 = vst [vmem:[#allocation2 + $0x178] sm:$0xff] %v1070
  %s1095 = smul.addr %s195, 8
  %s1096 = scalar_lea.vmem %s3, %s1095
  %s1097 = scalar_lea.sflag [#allocation5], 1
  %p1099 = scmp.lt.u32.totalorder 192, 8
  %p1100 = pneg %p1099
  // Predicated region
  $region176: #{_add_noise_tc.1} parent=0 // pred_check
    _
  $region177: #{_add_noise_tc.1} parent=0 // pred_check_branch
    %1102 = sbr.rel (%p1099) target = $region179
  $region178: #{_add_noise_tc.1} parent=0 // pred_region
    %s1118 = sand.u32 192, 7
    %p1119 = scmp.eq.s32.totalorder %s1118, 0
    // Predicated region
    $region191: #{_add_noise_tc.1} parent=178 // pred_check
      %p1120 = pneg %p1119
    $region192: #{_add_noise_tc.1} parent=178 // pred_check_branch
      %1122 = sbr.rel (%p1120) target = $region194
    $region193: #{_add_noise_tc.1} parent=178 // pred_region
      loop: start=0, step=1, limit=1
      $region195: #{_add_noise_tc.1} parent=193 // loop_pre_header
        _
      $region196: #{_add_noise_tc.1} parent=193 // loop_header
        %s1124 = sphi 0, %s1128
        %p1125 = scmp.ge.s32.totalorder %s1124, 1
        %s1129 = sphi %s198, %s198
        %s1130 = sphi %s1096, %s1096
      $region197: #{_add_noise_tc.1} parent=193 // loop_header_branch
        %1127 = sbr.rel (%p1125) target = $region201
      $region198: #{_add_noise_tc.1} parent=193 // loop_body
        %v1131 = vld [vmem:[%s1129] sm:$0xff]
        %1132 = vst [vmem:[%s1130] sm:$0xff] %v1131
        %v1133 = vld [vmem:[%s1129 + $0x8] sm:$0xff]
        %1134 = vst [vmem:[%s1130 + $0x8] sm:$0xff] %v1133
        %v1135 = vld [vmem:[%s1129 + $0x10] sm:$0xff]
        %1136 = vst [vmem:[%s1130 + $0x10] sm:$0xff] %v1135
        %v1137 = vld [vmem:[%s1129 + $0x18] sm:$0xff]
        %1138 = vst [vmem:[%s1130 + $0x18] sm:$0xff] %v1137
        %v1139 = vld [vmem:[%s1129 + $0x20] sm:$0xff]
        %1140 = vst [vmem:[%s1130 + $0x20] sm:$0xff] %v1139
        %v1141 = vld [vmem:[%s1129 + $0x28] sm:$0xff]
        %1142 = vst [vmem:[%s1130 + $0x28] sm:$0xff] %v1141
        %v1143 = vld [vmem:[%s1129 + $0x30] sm:$0xff]
        %1144 = vst [vmem:[%s1130 + $0x30] sm:$0xff] %v1143
        %v1145 = vld [vmem:[%s1129 + $0x38] sm:$0xff]
        %1146 = vst [vmem:[%s1130 + $0x38] sm:$0xff] %v1145
        %v1147 = vld [vmem:[%s1129 + $0x40] sm:$0xff]
        %1148 = vst [vmem:[%s1130 + $0x40] sm:$0xff] %v1147
        %v1149 = vld [vmem:[%s1129 + $0x48] sm:$0xff]
        %1150 = vst [vmem:[%s1130 + $0x48] sm:$0xff] %v1149
        %v1151 = vld [vmem:[%s1129 + $0x50] sm:$0xff]
        %1152 = vst [vmem:[%s1130 + $0x50] sm:$0xff] %v1151
        %v1153 = vld [vmem:[%s1129 + $0x58] sm:$0xff]
        %1154 = vst [vmem:[%s1130 + $0x58] sm:$0xff] %v1153
        %v1155 = vld [vmem:[%s1129 + $0x60] sm:$0xff]
        %1156 = vst [vmem:[%s1130 + $0x60] sm:$0xff] %v1155
        %v1157 = vld [vmem:[%s1129 + $0x68] sm:$0xff]
        %1158 = vst [vmem:[%s1130 + $0x68] sm:$0xff] %v1157
        %v1159 = vld [vmem:[%s1129 + $0x70] sm:$0xff]
        %1160 = vst [vmem:[%s1130 + $0x70] sm:$0xff] %v1159
        %v1161 = vld [vmem:[%s1129 + $0x78] sm:$0xff]
        %1162 = vst [vmem:[%s1130 + $0x78] sm:$0xff] %v1161
        %v1163 = vld [vmem:[%s1129 + $0x80] sm:$0xff]
        %1164 = vst [vmem:[%s1130 + $0x80] sm:$0xff] %v1163
        %v1165 = vld [vmem:[%s1129 + $0x88] sm:$0xff]
        %1166 = vst [vmem:[%s1130 + $0x88] sm:$0xff] %v1165
        %v1167 = vld [vmem:[%s1129 + $0x90] sm:$0xff]
        %1168 = vst [vmem:[%s1130 + $0x90] sm:$0xff] %v1167
        %v1169 = vld [vmem:[%s1129 + $0x98] sm:$0xff]
        %1170 = vst [vmem:[%s1130 + $0x98] sm:$0xff] %v1169
        %v1171 = vld [vmem:[%s1129 + $0xa0] sm:$0xff]
        %1172 = vst [vmem:[%s1130 + $0xa0] sm:$0xff] %v1171
        %v1173 = vld [vmem:[%s1129 + $0xa8] sm:$0xff]
        %1174 = vst [vmem:[%s1130 + $0xa8] sm:$0xff] %v1173
        %v1175 = vld [vmem:[%s1129 + $0xb0] sm:$0xff]
        %1176 = vst [vmem:[%s1130 + $0xb0] sm:$0xff] %v1175
        %v1177 = vld [vmem:[%s1129 + $0xb8] sm:$0xff]
        %1178 = vst [vmem:[%s1130 + $0xb8] sm:$0xff] %v1177
      $region199: #{_add_noise_tc.1} parent=193 // loop_footer
        %s1128 = sadd.s32 1, %s1124
      $region200: #{_add_noise_tc.1} parent=193 // loop_footer_branch
        %1123 = sbr.rel target = $region196
      $region201: #{_add_noise_tc.1} parent=193 // loop_exit
        _
    $region194: #{_add_noise_tc.1} parent=178 // pred_fallthru
      _
    %p1179 = pneg %p1119
    // Predicated region
    $region202: #{_add_noise_tc.1} parent=178 // pred_check
      _
    $region203: #{_add_noise_tc.1} parent=178 // pred_check_branch
      %1181 = sbr.rel (%p1119) target = $region205
    $region204: #{_add_noise_tc.1} parent=178 // pred_region
      %s1182 = sand.u32 192, 7
    $region205: #{_add_noise_tc.1} parent=178 // pred_fallthru
      _
  $region179: #{_add_noise_tc.1} parent=0 // pred_fallthru
    _
  // Predicated region
  $region180: #{_add_noise_tc.1} parent=0 // pred_check
    %p1103 = pneg %p1099
  $region181: #{_add_noise_tc.1} parent=0 // pred_check_branch
    %1105 = sbr.rel (%p1103) target = $region183
  $region182: #{_add_noise_tc.1} parent=0 // pred_region
    %s1106 = sshll.u32 1, 192
    %s1107 = ssub.s32 %s1106, 1
    loop: start=0, step=1, limit=1
    $region184: #{_add_noise_tc.1} parent=182 // loop_pre_header
      _
    $region185: #{_add_noise_tc.1} parent=182 // loop_header
      %s1109 = sphi 0, %s1113
      %p1110 = scmp.ge.s32.totalorder %s1109, 1
      %s1114 = sphi %s198, %s198
      %s1115 = sphi %s1096, %s1096
    $region186: #{_add_noise_tc.1} parent=182 // loop_header_branch
      %1112 = sbr.rel (%p1110) target = $region190
    $region187: #{_add_noise_tc.1} parent=182 // loop_body
      %v1116 = vld [vmem:[%s1114] sm:%s1107]
      %1117 = vst [vmem:[%s1115] sm:%s1107] %v1116
    $region188: #{_add_noise_tc.1} parent=182 // loop_footer
      %s1113 = sadd.s32 1, %s1109
    $region189: #{_add_noise_tc.1} parent=182 // loop_footer_branch
      %1108 = sbr.rel target = $region185
    $region190: #{_add_noise_tc.1} parent=182 // loop_exit
      _
  $region183: #{_add_noise_tc.1} parent=0 // pred_fallthru
    _
  // Predicated region
  $region206: #{_add_noise_tc.1} parent=0 // pred_check
    _
  $region207: #{_add_noise_tc.1} parent=0 // pred_check_branch
    %1185 = sbr.rel (0) target = $region209
  $region208: #{_add_noise_tc.1} parent=0 // pred_region
    %1186 = vsyncadd %s1097, 3072
  $region209: #{_add_noise_tc.1} parent=0 // pred_fallthru
    _
  %s1187 = sshll.u32 %s383, 4
  %1188 = dma.done [#allocation5], %s1187
  %s1189 = sshll.u32 %s383, 4
  %1190 = dma.done %s1097, %s1189
  %1191 = vsyncmov [#allocation4]
  %s1192 = vpop.sfrf %1191
  %p1193 = scmp.eq.s32.totalorder %s1192, 0
  %p1194 = pneg %p1193
  %1196 = shalt.err (%p1194)
  %s1197 = scalar_lea.sflag [#allocation4], 1
  %1198 = vsyncmov %s1197
  %s1199 = vpop.sfrf %1198
  %p1200 = scmp.eq.s32.totalorder %s1199, 0
  %p1201 = pneg %p1200
  %1203 = shalt.err (%p1201)
  %s1204 = scalar_lea.sflag [#allocation4], 2
  %1205 = vsyncmov %s1204
  %s1206 = vpop.sfrf %1205
  %p1207 = scmp.eq.s32.totalorder %s1206, 0
  %p1208 = pneg %p1207
  %1210 = shalt.err (%p1208)
  %s1211 = scalar_lea.sflag [#allocation4], 3
  %1212 = vsyncmov %s1211
  %s1213 = vpop.sfrf %1212
  %p1214 = scmp.eq.s32.totalorder %s1213, 0
  %p1215 = pneg %p1214
  %1217 = shalt.err (%p1215)
  %1218 = vsyncmov [#allocation5]
  %s1219 = vpop.sfrf %1218
  %p1220 = scmp.eq.s32.totalorder %s1219, 0
  %p1221 = pneg %p1220
  %1223 = shalt.err (%p1221)
  %s1224 = scalar_lea.sflag [#allocation5], 1
  %1225 = vsyncmov %s1224
  %s1226 = vpop.sfrf %1225
  %p1227 = scmp.eq.s32.totalorder %s1226, 0
  %p1228 = pneg %p1227
  %1230 = shalt.err (%p1228)

</llo_original>
